<compile_context>
chip_gen: v6e
topology: v6e:2x2x1
jax: 0.10.0
libtpu: 0.0.40
codegen_flags: <defaults>
</compile_context>

<pallas_src>
import functools

import jax
import jax.numpy as jnp
from jax.experimental import pallas as pl
from jax.experimental.pallas import tpu as pltpu


def _deconv_bn_relu_kernel(x_ref, w_ref, g_ref, beta_ref, o_ref, xp_ref, *,
                           cin, cout, h, w, ksz, eps):
    """Fused 4-phase transposed-conv (stride 2, k=3) + BatchNorm(batch stats) + ReLU.

    x_ref   : VMEM (N, Cin, H*W)          float32   (flat spatial, lane-dense)
    w_ref   : SMEM (Cin*Cout*K*K,)        float32   (original ConvTranspose2d layout)
    g_ref   : SMEM (Cout,)                float32   (BN gamma)
    beta_ref: SMEM (Cout,)                float32   (BN beta)
    o_ref   : VMEM (Cout, 4*N, H*W)       float32   sublane index = ph*N + n, ph = 2*py+px
    xp_ref  : VMEM (N, Cin, H*W + pad)    float32   scratch, zero tail for shifted taps
    """
    n = x_ref.shape[0]
    hw = h * w
    pad_lanes = xp_ref.shape[-1] - hw

    # --- stage input into the tail-zero-padded scratch (no padded input in HBM) ---
    xp_ref[:, :, hw:hw + pad_lanes] = jnp.zeros((n, cin, pad_lanes), jnp.float32)
    xp_ref[:, :, 0:hw] = x_ref[...].astype(jnp.float32)

    # Right-edge mask: a flat +1 / +(W+1) lane shift must not wrap into the next row.
    idx = jax.lax.broadcasted_iota(jnp.int32, (n, hw), 1)
    if (w & (w - 1)) == 0:
        col = jnp.bitwise_and(idx, w - 1)
    else:
        col = idx % w
    not_last_col = col != (w - 1)

    def wgt(ci, co, kh, kw):
        return w_ref[((ci * cout + co) * ksz + kh) * ksz + kw]

    # 8 accumulators: (Cout) x (4 sub-pixel phases), each (N, H*W), lane-dense.
    acc = [[jnp.zeros((n, hw), jnp.float32) for _ in range(4)] for _ in range(cout)]

    for ci in range(cin):
        # Shifted taps hoisted once per input channel (plain static ref slices into the
        # zero-tailed scratch; last-row reads fall into the zero tail automatically).
        x00 = xp_ref[:, ci, pl.ds(0, hw)]                                        # x[qy  , qx  ]
        x01 = jnp.where(not_last_col, xp_ref[:, ci, pl.ds(1, hw)], 0.0)          # x[qy  , qx+1]
        x10 = xp_ref[:, ci, pl.ds(w, hw)]                                        # x[qy+1, qx  ]
        x11 = jnp.where(not_last_col, xp_ref[:, ci, pl.ds(w + 1, hw)], 0.0)      # x[qy+1, qx+1]
        for co in range(cout):
            a = acc[co]
            # Phase (py, px): output pixel (2*qy + py, 2*qx + px);  ph = 2*py + px.
            a[0] = a[0] + x00 * wgt(ci, co, 1, 1)
            a[1] = a[1] + x00 * wgt(ci, co, 1, 2) + x01 * wgt(ci, co, 1, 0)
            a[2] = a[2] + x00 * wgt(ci, co, 2, 1) + x10 * wgt(ci, co, 0, 1)
            a[3] = (a[3] + x00 * wgt(ci, co, 2, 2) + x01 * wgt(ci, co, 2, 0)
                    + x10 * wgt(ci, co, 0, 2) + x11 * wgt(ci, co, 0, 0))

    # Conv bias omitted on purpose: batch-stats BatchNorm cancels it exactly.
    # Epilogue: assemble each channel's phases into its (4*N, HW) output slab (full
    # 8-sublane vregs), then BN stats (one sum + one sum-of-squares per channel) and a
    # single fused scale/shift/ReLU pass + dense writeback on full vregs.
    inv_cnt = 1.0 / float(n * 4 * hw)            # = 1 / (N * OH * OW)
    for co in range(cout):
        for ph in range(4):
            o_ref[co, pl.ds(ph * n, n), :] = acc[co][ph]
        slab = o_ref[co, :, :]                                  # (4*N, HW), fully written
        s = jnp.sum(slab)
        ss = jnp.sum(slab * slab)
        mean = s * inv_cnt
        var = jnp.maximum(ss * inv_cnt - mean * mean, 0.0)      # clamp for safety
        scale = g_ref[co] * jax.lax.rsqrt(var + eps)
        shift = beta_ref[co] - mean * scale
        # nn.ReLU(0.001): the positional arg is `inplace`, so the math is plain ReLU.
        o_ref[co, :, :] = jnp.maximum(slab * scale + shift, 0.0).astype(o_ref.dtype)


def conv2d_expand_forward(x, weight, bias, gamma, beta, *, kernel, stride=2, eps=1e-5):
    """x: (N, Cin, H, W) NCHW; weight: (Cin, Cout, K, K) (PyTorch ConvTranspose2d layout)."""
    n, cin, h, w = x.shape
    cout = cin // 2
    # Phase decomposition is specialised to the module's config: stride=2,
    # padding=(k-1)//2, output_padding=1, kernel=3.
    assert kernel == 3 and stride == 2, "kernel specialised to k=3, stride=2"
    del bias  # exactly cancelled by the batch-stats BatchNorm that follows

    hw = h * w
    oh, ow = 2 * h, 2 * w
    pad_lanes = ((w + 1 + 127) // 128) * 128     # zero tail >= W+1 for the shifted taps

    x_flat = x.reshape(n, cin, hw).astype(jnp.float32)     # free row-major reshape
    w_flat = weight.reshape(-1).astype(jnp.float32)        # (Cin*Cout*K*K,)

    kernel_fn = functools.partial(_deconv_bn_relu_kernel, cin=cin, cout=cout,
                                  h=h, w=w, ksz=kernel, eps=eps)

    out_ph = pl.pallas_call(
        kernel_fn,
        out_shape=jax.ShapeDtypeStruct((cout, 4 * n, hw), jnp.float32),
        in_specs=[
            pl.BlockSpec(memory_space=pltpu.MemorySpace.VMEM),   # x (N, Cin, H*W)
            pl.BlockSpec(memory_space=pltpu.MemorySpace.SMEM),   # flattened conv weights
            pl.BlockSpec(memory_space=pltpu.MemorySpace.SMEM),   # bn gamma
            pl.BlockSpec(memory_space=pltpu.MemorySpace.SMEM),   # bn beta
        ],
        out_specs=pl.BlockSpec(memory_space=pltpu.MemorySpace.VMEM),
        scratch_shapes=[pltpu.VMEM((n, cin, hw + pad_lanes), jnp.float32)],
        # Accurate (small) estimate: 9 FMAs per (ci, co, input pixel) in the 4-phase
        # decomposition (no multiplies against structural zeros).
        cost_estimate=pl.CostEstimate(
            flops=2 * 9 * n * cin * cout * hw,
            transcendentals=cout,
            bytes_accessed=4 * (n * cin * hw + cout * 4 * n * hw + w_flat.size + 2 * cout)),
    )(x_flat, w_flat, gamma.astype(jnp.float32), beta.astype(jnp.float32))

    # Phase-major (Cout, [ph, n], HW) -> NCHW.  One tiny XLA transpose of a 16 KiB array;
    # a real downstream consumer should accept the phase-major layout and skip this.
    out = out_ph.reshape(cout, 2, 2, n, h, w)              # (co, py, px, n, qy, qx)
    out = out.transpose(3, 0, 4, 1, 5, 2).reshape(n, cout, oh, ow)
    return out


if __name__ == "__main__":
    key = jax.random.PRNGKey(0)
    kx, kw, kb, kg, kbeta = jax.random.split(key, 5)

    N, CIN, H, W = 2, 4, 16, 16
    K = 3
    COUT = CIN // 2

    # Deterministic synthetic parameters (shapes from nn.ConvTranspose2d / nn.BatchNorm2d).
    x = jax.random.normal(kx, (N, CIN, H, W), jnp.float32)
    fan = CIN * K * K
    weight = jax.random.normal(kw, (CIN, COUT, K, K), jnp.float32) * (1.0 / fan) ** 0.5
    bias = jax.random.normal(kb, (COUT,), jnp.float32) * 0.1
    gamma = 1.0 + 0.1 * jax.random.normal(kg, (COUT,), jnp.float32)
    beta = 0.1 * jax.random.normal(kbeta, (COUT,), jnp.float32)
    # TODO(synk): BatchNorm running_mean/running_var buffer updates (stateful training side
    # effect) are not modeled; normalization uses batch statistics as in PyTorch train mode.

    fwd = jax.jit(functools.partial(conv2d_expand_forward, kernel=K))
    out = fwd(x, weight, bias, gamma, beta)
    out = jax.block_until_ready(out)
    assert out.shape == (N, COUT, 32, 32), out.shape

    # Independent reference via XLA (lhs-dilated correlation with flipped kernel).
    pad = (K - 1) // 2
    lo, hi = K - 1 - pad, K - 1 - pad + 1
    rhs = jnp.transpose(weight, (1, 0, 2, 3))[:, :, ::-1, ::-1]  # OIHW, flipped
    conv = jax.lax.conv_general_dilated(
        x, rhs, window_strides=(1, 1),
        padding=[(lo, hi), (lo, hi)],
        lhs_dilation=(2, 2),
        dimension_numbers=("NCHW", "OIHW", "NCHW"),
        precision=jax.lax.Precision.HIGHEST) + bias[None, :, None, None]
    mean = conv.mean(axis=(0, 2, 3), keepdims=True)
    var = ((conv - mean) ** 2).mean(axis=(0, 2, 3), keepdims=True)
    ref = jnp.maximum((conv - mean) * jax.lax.rsqrt(var + 1e-5)
                      * gamma[None, :, None, None] + beta[None, :, None, None], 0.0)

    err = float(jnp.max(jnp.abs(out - ref)))
    assert jnp.allclose(out, ref, atol=2e-4, rtol=2e-4), err
    print("KERNEL_OK")
</pallas_src>

<mosaic_0001>
module attributes {stable_mosaic.version = 11 : i64} {
  func.func @_deconv_bn_relu_kernel(%arg0: memref<2x4x256xf32, #tpu.memory_space<vmem>>, %arg1: memref<72xf32, #tpu.memory_space<smem>>, %arg2: memref<2xf32, #tpu.memory_space<smem>>, %arg3: memref<2xf32, #tpu.memory_space<smem>>, %arg4: memref<2x8x256xf32, #tpu.memory_space<vmem>>, %arg5: memref<2x4x384xf32, #tpu.memory_space<vmem>>) attributes {dimension_semantics = [], scalar_prefetch = 0 : i64, scratch_operands = 1 : i64, tpu.core_type = #tpu.core_type<tc>} {
    %cst = arith.constant 0.000000e+00 : f32
    %0 = vector.broadcast %cst : f32 to vector<2x4x128xf32>
    %c0 = arith.constant 0 : index
    %c0_0 = arith.constant 0 : index
    %c256 = arith.constant 256 : index
    %1 = vector.load %arg5[%c0, %c0_0, %c256] : memref<2x4x384xf32, #tpu.memory_space<vmem>>, vector<2x4x128xf32>
    tpu.vector_store %arg5[%c0, %c0_0, %c256], %0 {strides = array<i32>} : memref<2x4x384xf32, #tpu.memory_space<vmem>>, vector<2x4x128xf32>,
    %c0_1 = arith.constant 0 : index
    %c0_2 = arith.constant 0 : index
    %c0_3 = arith.constant 0 : index
    %2 = vector.load %arg0[%c0_1, %c0_2, %c0_3] : memref<2x4x256xf32, #tpu.memory_space<vmem>>, vector<2x4x256xf32>
    %c0_4 = arith.constant 0 : index
    %c0_5 = arith.constant 0 : index
    %c0_6 = arith.constant 0 : index
    %3 = vector.load %arg5[%c0_4, %c0_5, %c0_6] : memref<2x4x384xf32, #tpu.memory_space<vmem>>, vector<2x4x256xf32>
    tpu.vector_store %arg5[%c0_4, %c0_5, %c0_6], %2 {strides = array<i32>} : memref<2x4x384xf32, #tpu.memory_space<vmem>>, vector<2x4x256xf32>,
    %4 = tpu.iota {dimensions = array<i32: 1>} : vector<2x256xi32>
    %c15_i32 = arith.constant 15 : i32
    %5 = vector.broadcast %c15_i32 : i32 to vector<2x256xi32>
    %6 = arith.andi %4, %5 : vector<2x256xi32>
    %c15_i32_7 = arith.constant 15 : i32
    %7 = vector.broadcast %c15_i32_7 : i32 to vector<2x256xi32>
    %8 = arith.cmpi ne, %6, %7 : vector<2x256xi32>
    %cst_8 = arith.constant 0.000000e+00 : f32
    %9 = vector.broadcast %cst_8 : f32 to vector<2x256xf32>
    %cst_9 = arith.constant 0.000000e+00 : f32
    %10 = vector.broadcast %cst_9 : f32 to vector<2x256xf32>
    %cst_10 = arith.constant 0.000000e+00 : f32
    %11 = vector.broadcast %cst_10 : f32 to vector<2x256xf32>
    %cst_11 = arith.constant 0.000000e+00 : f32
    %12 = vector.broadcast %cst_11 : f32 to vector<2x256xf32>
    %cst_12 = arith.constant 0.000000e+00 : f32
    %13 = vector.broadcast %cst_12 : f32 to vector<2x256xf32>
    %cst_13 = arith.constant 0.000000e+00 : f32
    %14 = vector.broadcast %cst_13 : f32 to vector<2x256xf32>
    %cst_14 = arith.constant 0.000000e+00 : f32
    %15 = vector.broadcast %cst_14 : f32 to vector<2x256xf32>
    %cst_15 = arith.constant 0.000000e+00 : f32
    %16 = vector.broadcast %cst_15 : f32 to vector<2x256xf32>
    %c0_16 = arith.constant 0 : index
    %c0_17 = arith.constant 0 : index
    %c0_18 = arith.constant 0 : index
    %17 = vector.load %arg5[%c0_16, %c0_17, %c0_18] : memref<2x4x384xf32, #tpu.memory_space<vmem>>, vector<2x1x256xf32>
    %18 = vector.shape_cast %17 : vector<2x1x256xf32> to vector<2x256xf32>
    %c0_19 = arith.constant 0 : index
    %c0_20 = arith.constant 0 : index
    %c1 = arith.constant 1 : index
    %19 = vector.load %arg5[%c0_19, %c0_20, %c1] : memref<2x4x384xf32, #tpu.memory_space<vmem>>, vector<2x1x256xf32>
    %20 = vector.shape_cast %19 : vector<2x1x256xf32> to vector<2x256xf32>
    %cst_21 = arith.constant 0.000000e+00 : f32
    %21 = vector.broadcast %cst_21 : f32 to vector<2x256xf32>
    %22 = arith.select %8, %20, %21 : vector<2x256xi1>, vector<2x256xf32>
    %c0_22 = arith.constant 0 : index
    %c0_23 = arith.constant 0 : index
    %c16 = arith.constant 16 : index
    %23 = vector.load %arg5[%c0_22, %c0_23, %c16] : memref<2x4x384xf32, #tpu.memory_space<vmem>>, vector<2x1x256xf32>
    %24 = vector.shape_cast %23 : vector<2x1x256xf32> to vector<2x256xf32>
    %c0_24 = arith.constant 0 : index
    %c0_25 = arith.constant 0 : index
    %c17 = arith.constant 17 : index
    %25 = vector.load %arg5[%c0_24, %c0_25, %c17] : memref<2x4x384xf32, #tpu.memory_space<vmem>>, vector<2x1x256xf32>
    %26 = vector.shape_cast %25 : vector<2x1x256xf32> to vector<2x256xf32>
    %cst_26 = arith.constant 0.000000e+00 : f32
    %27 = vector.broadcast %cst_26 : f32 to vector<2x256xf32>
    %28 = arith.select %8, %26, %27 : vector<2x256xi1>, vector<2x256xf32>
    %c4 = arith.constant 4 : index
    %29 = memref.load %arg1[%c4] : memref<72xf32, #tpu.memory_space<smem>>
    %30 = vector.broadcast %29 : f32 to vector<2x256xf32>
    %31 = arith.mulf %18, %30 : vector<2x256xf32>
    %32 = arith.addf %9, %31 : vector<2x256xf32>
    %c5 = arith.constant 5 : index
    %33 = memref.load %arg1[%c5] : memref<72xf32, #tpu.memory_space<smem>>
    %34 = vector.broadcast %33 : f32 to vector<2x256xf32>
    %35 = arith.mulf %18, %34 : vector<2x256xf32>
    %36 = arith.addf %10, %35 : vector<2x256xf32>
    %c3 = arith.constant 3 : index
    %37 = memref.load %arg1[%c3] : memref<72xf32, #tpu.memory_space<smem>>
    %38 = vector.broadcast %37 : f32 to vector<2x256xf32>
    %39 = arith.mulf %22, %38 : vector<2x256xf32>
    %40 = arith.addf %36, %39 : vector<2x256xf32>
    %c7 = arith.constant 7 : index
    %41 = memref.load %arg1[%c7] : memref<72xf32, #tpu.memory_space<smem>>
    %42 = vector.broadcast %41 : f32 to vector<2x256xf32>
    %43 = arith.mulf %18, %42 : vector<2x256xf32>
    %44 = arith.addf %11, %43 : vector<2x256xf32>
    %c1_27 = arith.constant 1 : index
    %45 = memref.load %arg1[%c1_27] : memref<72xf32, #tpu.memory_space<smem>>
    %46 = vector.broadcast %45 : f32 to vector<2x256xf32>
    %47 = arith.mulf %24, %46 : vector<2x256xf32>
    %48 = arith.addf %44, %47 : vector<2x256xf32>
    %c8 = arith.constant 8 : index
    %49 = memref.load %arg1[%c8] : memref<72xf32, #tpu.memory_space<smem>>
    %50 = vector.broadcast %49 : f32 to vector<2x256xf32>
    %51 = arith.mulf %18, %50 : vector<2x256xf32>
    %52 = arith.addf %12, %51 : vector<2x256xf32>
    %c6 = arith.constant 6 : index
    %53 = memref.load %arg1[%c6] : memref<72xf32, #tpu.memory_space<smem>>
    %54 = vector.broadcast %53 : f32 to vector<2x256xf32>
    %55 = arith.mulf %22, %54 : vector<2x256xf32>
    %56 = arith.addf %52, %55 : vector<2x256xf32>
    %c2 = arith.constant 2 : index
    %57 = memref.load %arg1[%c2] : memref<72xf32, #tpu.memory_space<smem>>
    %58 = vector.broadcast %57 : f32 to vector<2x256xf32>
    %59 = arith.mulf %24, %58 : vector<2x256xf32>
    %60 = arith.addf %56, %59 : vector<2x256xf32>
    %c0_28 = arith.constant 0 : index
    %61 = memref.load %arg1[%c0_28] : memref<72xf32, #tpu.memory_space<smem>>
    %62 = vector.broadcast %61 : f32 to vector<2x256xf32>
    %63 = arith.mulf %28, %62 : vector<2x256xf32>
    %64 = arith.addf %60, %63 : vector<2x256xf32>
    %c13 = arith.constant 13 : index
    %65 = memref.load %arg1[%c13] : memref<72xf32, #tpu.memory_space<smem>>
    %66 = vector.broadcast %65 : f32 to vector<2x256xf32>
    %67 = arith.mulf %18, %66 : vector<2x256xf32>
    %68 = arith.addf %13, %67 : vector<2x256xf32>
    %c14 = arith.constant 14 : index
    %69 = memref.load %arg1[%c14] : memref<72xf32, #tpu.memory_space<smem>>
    %70 = vector.broadcast %69 : f32 to vector<2x256xf32>
    %71 = arith.mulf %18, %70 : vector<2x256xf32>
    %72 = arith.addf %14, %71 : vector<2x256xf32>
    %c12 = arith.constant 12 : index
    %73 = memref.load %arg1[%c12] : memref<72xf32, #tpu.memory_space<smem>>
    %74 = vector.broadcast %73 : f32 to vector<2x256xf32>
    %75 = arith.mulf %22, %74 : vector<2x256xf32>
    %76 = arith.addf %72, %75 : vector<2x256xf32>
    %c16_29 = arith.constant 16 : index
    %77 = memref.load %arg1[%c16_29] : memref<72xf32, #tpu.memory_space<smem>>
    %78 = vector.broadcast %77 : f32 to vector<2x256xf32>
    %79 = arith.mulf %18, %78 : vector<2x256xf32>
    %80 = arith.addf %15, %79 : vector<2x256xf32>
    %c10 = arith.constant 10 : index
    %81 = memref.load %arg1[%c10] : memref<72xf32, #tpu.memory_space<smem>>
    %82 = vector.broadcast %81 : f32 to vector<2x256xf32>
    %83 = arith.mulf %24, %82 : vector<2x256xf32>
    %84 = arith.addf %80, %83 : vector<2x256xf32>
    %c17_30 = arith.constant 17 : index
    %85 = memref.load %arg1[%c17_30] : memref<72xf32, #tpu.memory_space<smem>>
    %86 = vector.broadcast %85 : f32 to vector<2x256xf32>
    %87 = arith.mulf %18, %86 : vector<2x256xf32>
    %88 = arith.addf %16, %87 : vector<2x256xf32>
    %c15 = arith.constant 15 : index
    %89 = memref.load %arg1[%c15] : memref<72xf32, #tpu.memory_space<smem>>
    %90 = vector.broadcast %89 : f32 to vector<2x256xf32>
    %91 = arith.mulf %22, %90 : vector<2x256xf32>
    %92 = arith.addf %88, %91 : vector<2x256xf32>
    %c11 = arith.constant 11 : index
    %93 = memref.load %arg1[%c11] : memref<72xf32, #tpu.memory_space<smem>>
    %94 = vector.broadcast %93 : f32 to vector<2x256xf32>
    %95 = arith.mulf %24, %94 : vector<2x256xf32>
    %96 = arith.addf %92, %95 : vector<2x256xf32>
    %c9 = arith.constant 9 : index
    %97 = memref.load %arg1[%c9] : memref<72xf32, #tpu.memory_space<smem>>
    %98 = vector.broadcast %97 : f32 to vector<2x256xf32>
    %99 = arith.mulf %28, %98 : vector<2x256xf32>
    %100 = arith.addf %96, %99 : vector<2x256xf32>
    %c0_31 = arith.constant 0 : index
    %c1_32 = arith.constant 1 : index
    %c0_33 = arith.constant 0 : index
    %101 = vector.load %arg5[%c0_31, %c1_32, %c0_33] : memref<2x4x384xf32, #tpu.memory_space<vmem>>, vector<2x1x256xf32>
    %102 = vector.shape_cast %101 : vector<2x1x256xf32> to vector<2x256xf32>
    %c0_34 = arith.constant 0 : index
    %c1_35 = arith.constant 1 : index
    %c1_36 = arith.constant 1 : index
    %103 = vector.load %arg5[%c0_34, %c1_35, %c1_36] : memref<2x4x384xf32, #tpu.memory_space<vmem>>, vector<2x1x256xf32>
    %104 = vector.shape_cast %103 : vector<2x1x256xf32> to vector<2x256xf32>
    %cst_37 = arith.constant 0.000000e+00 : f32
    %105 = vector.broadcast %cst_37 : f32 to vector<2x256xf32>
    %106 = arith.select %8, %104, %105 : vector<2x256xi1>, vector<2x256xf32>
    %c0_38 = arith.constant 0 : index
    %c1_39 = arith.constant 1 : index
    %c16_40 = arith.constant 16 : index
    %107 = vector.load %arg5[%c0_38, %c1_39, %c16_40] : memref<2x4x384xf32, #tpu.memory_space<vmem>>, vector<2x1x256xf32>
    %108 = vector.shape_cast %107 : vector<2x1x256xf32> to vector<2x256xf32>
    %c0_41 = arith.constant 0 : index
    %c1_42 = arith.constant 1 : index
    %c17_43 = arith.constant 17 : index
    %109 = vector.load %arg5[%c0_41, %c1_42, %c17_43] : memref<2x4x384xf32, #tpu.memory_space<vmem>>, vector<2x1x256xf32>
    %110 = vector.shape_cast %109 : vector<2x1x256xf32> to vector<2x256xf32>
    %cst_44 = arith.constant 0.000000e+00 : f32
    %111 = vector.broadcast %cst_44 : f32 to vector<2x256xf32>
    %112 = arith.select %8, %110, %111 : vector<2x256xi1>, vector<2x256xf32>
    %c22 = arith.constant 22 : index
    %113 = memref.load %arg1[%c22] : memref<72xf32, #tpu.memory_space<smem>>
    %114 = vector.broadcast %113 : f32 to vector<2x256xf32>
    %115 = arith.mulf %102, %114 : vector<2x256xf32>
    %116 = arith.addf %32, %115 : vector<2x256xf32>
    %c23 = arith.constant 23 : index
    %117 = memref.load %arg1[%c23] : memref<72xf32, #tpu.memory_space<smem>>
    %118 = vector.broadcast %117 : f32 to vector<2x256xf32>
    %119 = arith.mulf %102, %118 : vector<2x256xf32>
    %120 = arith.addf %40, %119 : vector<2x256xf32>
    %c21 = arith.constant 21 : index
    %121 = memref.load %arg1[%c21] : memref<72xf32, #tpu.memory_space<smem>>
    %122 = vector.broadcast %121 : f32 to vector<2x256xf32>
    %123 = arith.mulf %106, %122 : vector<2x256xf32>
    %124 = arith.addf %120, %123 : vector<2x256xf32>
    %c25 = arith.constant 25 : index
    %125 = memref.load %arg1[%c25] : memref<72xf32, #tpu.memory_space<smem>>
    %126 = vector.broadcast %125 : f32 to vector<2x256xf32>
    %127 = arith.mulf %102, %126 : vector<2x256xf32>
    %128 = arith.addf %48, %127 : vector<2x256xf32>
    %c19 = arith.constant 19 : index
    %129 = memref.load %arg1[%c19] : memref<72xf32, #tpu.memory_space<smem>>
    %130 = vector.broadcast %129 : f32 to vector<2x256xf32>
    %131 = arith.mulf %108, %130 : vector<2x256xf32>
    %132 = arith.addf %128, %131 : vector<2x256xf32>
    %c26 = arith.constant 26 : index
    %133 = memref.load %arg1[%c26] : memref<72xf32, #tpu.memory_space<smem>>
    %134 = vector.broadcast %133 : f32 to vector<2x256xf32>
    %135 = arith.mulf %102, %134 : vector<2x256xf32>
    %136 = arith.addf %64, %135 : vector<2x256xf32>
    %c24 = arith.constant 24 : index
    %137 = memref.load %arg1[%c24] : memref<72xf32, #tpu.memory_space<smem>>
    %138 = vector.broadcast %137 : f32 to vector<2x256xf32>
    %139 = arith.mulf %106, %138 : vector<2x256xf32>
    %140 = arith.addf %136, %139 : vector<2x256xf32>
    %c20 = arith.constant 20 : index
    %141 = memref.load %arg1[%c20] : memref<72xf32, #tpu.memory_space<smem>>
    %142 = vector.broadcast %141 : f32 to vector<2x256xf32>
    %143 = arith.mulf %108, %142 : vector<2x256xf32>
    %144 = arith.addf %140, %143 : vector<2x256xf32>
    %c18 = arith.constant 18 : index
    %145 = memref.load %arg1[%c18] : memref<72xf32, #tpu.memory_space<smem>>
    %146 = vector.broadcast %145 : f32 to vector<2x256xf32>
    %147 = arith.mulf %112, %146 : vector<2x256xf32>
    %148 = arith.addf %144, %147 : vector<2x256xf32>
    %c31 = arith.constant 31 : index
    %149 = memref.load %arg1[%c31] : memref<72xf32, #tpu.memory_space<smem>>
    %150 = vector.broadcast %149 : f32 to vector<2x256xf32>
    %151 = arith.mulf %102, %150 : vector<2x256xf32>
    %152 = arith.addf %68, %151 : vector<2x256xf32>
    %c32 = arith.constant 32 : index
    %153 = memref.load %arg1[%c32] : memref<72xf32, #tpu.memory_space<smem>>
    %154 = vector.broadcast %153 : f32 to vector<2x256xf32>
    %155 = arith.mulf %102, %154 : vector<2x256xf32>
    %156 = arith.addf %76, %155 : vector<2x256xf32>
    %c30 = arith.constant 30 : index
    %157 = memref.load %arg1[%c30] : memref<72xf32, #tpu.memory_space<smem>>
    %158 = vector.broadcast %157 : f32 to vector<2x256xf32>
    %159 = arith.mulf %106, %158 : vector<2x256xf32>
    %160 = arith.addf %156, %159 : vector<2x256xf32>
    %c34 = arith.constant 34 : index
    %161 = memref.load %arg1[%c34] : memref<72xf32, #tpu.memory_space<smem>>
    %162 = vector.broadcast %161 : f32 to vector<2x256xf32>
    %163 = arith.mulf %102, %162 : vector<2x256xf32>
    %164 = arith.addf %84, %163 : vector<2x256xf32>
    %c28 = arith.constant 28 : index
    %165 = memref.load %arg1[%c28] : memref<72xf32, #tpu.memory_space<smem>>
    %166 = vector.broadcast %165 : f32 to vector<2x256xf32>
    %167 = arith.mulf %108, %166 : vector<2x256xf32>
    %168 = arith.addf %164, %167 : vector<2x256xf32>
    %c35 = arith.constant 35 : index
    %169 = memref.load %arg1[%c35] : memref<72xf32, #tpu.memory_space<smem>>
    %170 = vector.broadcast %169 : f32 to vector<2x256xf32>
    %171 = arith.mulf %102, %170 : vector<2x256xf32>
    %172 = arith.addf %100, %171 : vector<2x256xf32>
    %c33 = arith.constant 33 : index
    %173 = memref.load %arg1[%c33] : memref<72xf32, #tpu.memory_space<smem>>
    %174 = vector.broadcast %173 : f32 to vector<2x256xf32>
    %175 = arith.mulf %106, %174 : vector<2x256xf32>
    %176 = arith.addf %172, %175 : vector<2x256xf32>
    %c29 = arith.constant 29 : index
    %177 = memref.load %arg1[%c29] : memref<72xf32, #tpu.memory_space<smem>>
    %178 = vector.broadcast %177 : f32 to vector<2x256xf32>
    %179 = arith.mulf %108, %178 : vector<2x256xf32>
    %180 = arith.addf %176, %179 : vector<2x256xf32>
    %c27 = arith.constant 27 : index
    %181 = memref.load %arg1[%c27] : memref<72xf32, #tpu.memory_space<smem>>
    %182 = vector.broadcast %181 : f32 to vector<2x256xf32>
    %183 = arith.mulf %112, %182 : vector<2x256xf32>
    %184 = arith.addf %180, %183 : vector<2x256xf32>
    %c0_45 = arith.constant 0 : index
    %c2_46 = arith.constant 2 : index
    %c0_47 = arith.constant 0 : index
    %185 = vector.load %arg5[%c0_45, %c2_46, %c0_47] : memref<2x4x384xf32, #tpu.memory_space<vmem>>, vector<2x1x256xf32>
    %186 = vector.shape_cast %185 : vector<2x1x256xf32> to vector<2x256xf32>
    %c0_48 = arith.constant 0 : index
    %c2_49 = arith.constant 2 : index
    %c1_50 = arith.constant 1 : index
    %187 = vector.load %arg5[%c0_48, %c2_49, %c1_50] : memref<2x4x384xf32, #tpu.memory_space<vmem>>, vector<2x1x256xf32>
    %188 = vector.shape_cast %187 : vector<2x1x256xf32> to vector<2x256xf32>
    %cst_51 = arith.constant 0.000000e+00 : f32
    %189 = vector.broadcast %cst_51 : f32 to vector<2x256xf32>
    %190 = arith.select %8, %188, %189 : vector<2x256xi1>, vector<2x256xf32>
    %c0_52 = arith.constant 0 : index
    %c2_53 = arith.constant 2 : index
    %c16_54 = arith.constant 16 : index
    %191 = vector.load %arg5[%c0_52, %c2_53, %c16_54] : memref<2x4x384xf32, #tpu.memory_space<vmem>>, vector<2x1x256xf32>
    %192 = vector.shape_cast %191 : vector<2x1x256xf32> to vector<2x256xf32>
    %c0_55 = arith.constant 0 : index
    %c2_56 = arith.constant 2 : index
    %c17_57 = arith.constant 17 : index
    %193 = vector.load %arg5[%c0_55, %c2_56, %c17_57] : memref<2x4x384xf32, #tpu.memory_space<vmem>>, vector<2x1x256xf32>
    %194 = vector.shape_cast %193 : vector<2x1x256xf32> to vector<2x256xf32>
    %cst_58 = arith.constant 0.000000e+00 : f32
    %195 = vector.broadcast %cst_58 : f32 to vector<2x256xf32>
    %196 = arith.select %8, %194, %195 : vector<2x256xi1>, vector<2x256xf32>
    %c40 = arith.constant 40 : index
    %197 = memref.load %arg1[%c40] : memref<72xf32, #tpu.memory_space<smem>>
    %198 = vector.broadcast %197 : f32 to vector<2x256xf32>
    %199 = arith.mulf %186, %198 : vector<2x256xf32>
    %200 = arith.addf %116, %199 : vector<2x256xf32>
    %c41 = arith.constant 41 : index
    %201 = memref.load %arg1[%c41] : memref<72xf32, #tpu.memory_space<smem>>
    %202 = vector.broadcast %201 : f32 to vector<2x256xf32>
    %203 = arith.mulf %186, %202 : vector<2x256xf32>
    %204 = arith.addf %124, %203 : vector<2x256xf32>
    %c39 = arith.constant 39 : index
    %205 = memref.load %arg1[%c39] : memref<72xf32, #tpu.memory_space<smem>>
    %206 = vector.broadcast %205 : f32 to vector<2x256xf32>
    %207 = arith.mulf %190, %206 : vector<2x256xf32>
    %208 = arith.addf %204, %207 : vector<2x256xf32>
    %c43 = arith.constant 43 : index
    %209 = memref.load %arg1[%c43] : memref<72xf32, #tpu.memory_space<smem>>
    %210 = vector.broadcast %209 : f32 to vector<2x256xf32>
    %211 = arith.mulf %186, %210 : vector<2x256xf32>
    %212 = arith.addf %132, %211 : vector<2x256xf32>
    %c37 = arith.constant 37 : index
    %213 = memref.load %arg1[%c37] : memref<72xf32, #tpu.memory_space<smem>>
    %214 = vector.broadcast %213 : f32 to vector<2x256xf32>
    %215 = arith.mulf %192, %214 : vector<2x256xf32>
    %216 = arith.addf %212, %215 : vector<2x256xf32>
    %c44 = arith.constant 44 : index
    %217 = memref.load %arg1[%c44] : memref<72xf32, #tpu.memory_space<smem>>
    %218 = vector.broadcast %217 : f32 to vector<2x256xf32>
    %219 = arith.mulf %186, %218 : vector<2x256xf32>
    %220 = arith.addf %148, %219 : vector<2x256xf32>
    %c42 = arith.constant 42 : index
    %221 = memref.load %arg1[%c42] : memref<72xf32, #tpu.memory_space<smem>>
    %222 = vector.broadcast %221 : f32 to vector<2x256xf32>
    %223 = arith.mulf %190, %222 : vector<2x256xf32>
    %224 = arith.addf %220, %223 : vector<2x256xf32>
    %c38 = arith.constant 38 : index
    %225 = memref.load %arg1[%c38] : memref<72xf32, #tpu.memory_space<smem>>
    %226 = vector.broadcast %225 : f32 to vector<2x256xf32>
    %227 = arith.mulf %192, %226 : vector<2x256xf32>
    %228 = arith.addf %224, %227 : vector<2x256xf32>
    %c36 = arith.constant 36 : index
    %229 = memref.load %arg1[%c36] : memref<72xf32, #tpu.memory_space<smem>>
    %230 = vector.broadcast %229 : f32 to vector<2x256xf32>
    %231 = arith.mulf %196, %230 : vector<2x256xf32>
    %232 = arith.addf %228, %231 : vector<2x256xf32>
    %c49 = arith.constant 49 : index
    %233 = memref.load %arg1[%c49] : memref<72xf32, #tpu.memory_space<smem>>
    %234 = vector.broadcast %233 : f32 to vector<2x256xf32>
    %235 = arith.mulf %186, %234 : vector<2x256xf32>
    %236 = arith.addf %152, %235 : vector<2x256xf32>
    %c50 = arith.constant 50 : index
    %237 = memref.load %arg1[%c50] : memref<72xf32, #tpu.memory_space<smem>>
    %238 = vector.broadcast %237 : f32 to vector<2x256xf32>
    %239 = arith.mulf %186, %238 : vector<2x256xf32>
    %240 = arith.addf %160, %239 : vector<2x256xf32>
    %c48 = arith.constant 48 : index
    %241 = memref.load %arg1[%c48] : memref<72xf32, #tpu.memory_space<smem>>
    %242 = vector.broadcast %241 : f32 to vector<2x256xf32>
    %243 = arith.mulf %190, %242 : vector<2x256xf32>
    %244 = arith.addf %240, %243 : vector<2x256xf32>
    %c52 = arith.constant 52 : index
    %245 = memref.load %arg1[%c52] : memref<72xf32, #tpu.memory_space<smem>>
    %246 = vector.broadcast %245 : f32 to vector<2x256xf32>
    %247 = arith.mulf %186, %246 : vector<2x256xf32>
    %248 = arith.addf %168, %247 : vector<2x256xf32>
    %c46 = arith.constant 46 : index
    %249 = memref.load %arg1[%c46] : memref<72xf32, #tpu.memory_space<smem>>
    %250 = vector.broadcast %249 : f32 to vector<2x256xf32>
    %251 = arith.mulf %192, %250 : vector<2x256xf32>
    %252 = arith.addf %248, %251 : vector<2x256xf32>
    %c53 = arith.constant 53 : index
    %253 = memref.load %arg1[%c53] : memref<72xf32, #tpu.memory_space<smem>>
    %254 = vector.broadcast %253 : f32 to vector<2x256xf32>
    %255 = arith.mulf %186, %254 : vector<2x256xf32>
    %256 = arith.addf %184, %255 : vector<2x256xf32>
    %c51 = arith.constant 51 : index
    %257 = memref.load %arg1[%c51] : memref<72xf32, #tpu.memory_space<smem>>
    %258 = vector.broadcast %257 : f32 to vector<2x256xf32>
    %259 = arith.mulf %190, %258 : vector<2x256xf32>
    %260 = arith.addf %256, %259 : vector<2x256xf32>
    %c47 = arith.constant 47 : index
    %261 = memref.load %arg1[%c47] : memref<72xf32, #tpu.memory_space<smem>>
    %262 = vector.broadcast %261 : f32 to vector<2x256xf32>
    %263 = arith.mulf %192, %262 : vector<2x256xf32>
    %264 = arith.addf %260, %263 : vector<2x256xf32>
    %c45 = arith.constant 45 : index
    %265 = memref.load %arg1[%c45] : memref<72xf32, #tpu.memory_space<smem>>
    %266 = vector.broadcast %265 : f32 to vector<2x256xf32>
    %267 = arith.mulf %196, %266 : vector<2x256xf32>
    %268 = arith.addf %264, %267 : vector<2x256xf32>
    %c0_59 = arith.constant 0 : index
    %c3_60 = arith.constant 3 : index
    %c0_61 = arith.constant 0 : index
    %269 = vector.load %arg5[%c0_59, %c3_60, %c0_61] : memref<2x4x384xf32, #tpu.memory_space<vmem>>, vector<2x1x256xf32>
    %270 = vector.shape_cast %269 : vector<2x1x256xf32> to vector<2x256xf32>
    %c0_62 = arith.constant 0 : index
    %c3_63 = arith.constant 3 : index
    %c1_64 = arith.constant 1 : index
    %271 = vector.load %arg5[%c0_62, %c3_63, %c1_64] : memref<2x4x384xf32, #tpu.memory_space<vmem>>, vector<2x1x256xf32>
    %272 = vector.shape_cast %271 : vector<2x1x256xf32> to vector<2x256xf32>
    %cst_65 = arith.constant 0.000000e+00 : f32
    %273 = vector.broadcast %cst_65 : f32 to vector<2x256xf32>
    %274 = arith.select %8, %272, %273 : vector<2x256xi1>, vector<2x256xf32>
    %c0_66 = arith.constant 0 : index
    %c3_67 = arith.constant 3 : index
    %c16_68 = arith.constant 16 : index
    %275 = vector.load %arg5[%c0_66, %c3_67, %c16_68] : memref<2x4x384xf32, #tpu.memory_space<vmem>>, vector<2x1x256xf32>
    %276 = vector.shape_cast %275 : vector<2x1x256xf32> to vector<2x256xf32>
    %c0_69 = arith.constant 0 : index
    %c3_70 = arith.constant 3 : index
    %c17_71 = arith.constant 17 : index
    %277 = vector.load %arg5[%c0_69, %c3_70, %c17_71] : memref<2x4x384xf32, #tpu.memory_space<vmem>>, vector<2x1x256xf32>
    %278 = vector.shape_cast %277 : vector<2x1x256xf32> to vector<2x256xf32>
    %cst_72 = arith.constant 0.000000e+00 : f32
    %279 = vector.broadcast %cst_72 : f32 to vector<2x256xf32>
    %280 = arith.select %8, %278, %279 : vector<2x256xi1>, vector<2x256xf32>
    %c58 = arith.constant 58 : index
    %281 = memref.load %arg1[%c58] : memref<72xf32, #tpu.memory_space<smem>>
    %282 = vector.broadcast %281 : f32 to vector<2x256xf32>
    %283 = arith.mulf %270, %282 : vector<2x256xf32>
    %284 = arith.addf %200, %283 : vector<2x256xf32>
    %c59 = arith.constant 59 : index
    %285 = memref.load %arg1[%c59] : memref<72xf32, #tpu.memory_space<smem>>
    %286 = vector.broadcast %285 : f32 to vector<2x256xf32>
    %287 = arith.mulf %270, %286 : vector<2x256xf32>
    %288 = arith.addf %208, %287 : vector<2x256xf32>
    %c57 = arith.constant 57 : index
    %289 = memref.load %arg1[%c57] : memref<72xf32, #tpu.memory_space<smem>>
    %290 = vector.broadcast %289 : f32 to vector<2x256xf32>
    %291 = arith.mulf %274, %290 : vector<2x256xf32>
    %292 = arith.addf %288, %291 : vector<2x256xf32>
    %c61 = arith.constant 61 : index
    %293 = memref.load %arg1[%c61] : memref<72xf32, #tpu.memory_space<smem>>
    %294 = vector.broadcast %293 : f32 to vector<2x256xf32>
    %295 = arith.mulf %270, %294 : vector<2x256xf32>
    %296 = arith.addf %216, %295 : vector<2x256xf32>
    %c55 = arith.constant 55 : index
    %297 = memref.load %arg1[%c55] : memref<72xf32, #tpu.memory_space<smem>>
    %298 = vector.broadcast %297 : f32 to vector<2x256xf32>
    %299 = arith.mulf %276, %298 : vector<2x256xf32>
    %300 = arith.addf %296, %299 : vector<2x256xf32>
    %c62 = arith.constant 62 : index
    %301 = memref.load %arg1[%c62] : memref<72xf32, #tpu.memory_space<smem>>
    %302 = vector.broadcast %301 : f32 to vector<2x256xf32>
    %303 = arith.mulf %270, %302 : vector<2x256xf32>
    %304 = arith.addf %232, %303 : vector<2x256xf32>
    %c60 = arith.constant 60 : index
    %305 = memref.load %arg1[%c60] : memref<72xf32, #tpu.memory_space<smem>>
    %306 = vector.broadcast %305 : f32 to vector<2x256xf32>
    %307 = arith.mulf %274, %306 : vector<2x256xf32>
    %308 = arith.addf %304, %307 : vector<2x256xf32>
    %c56 = arith.constant 56 : index
    %309 = memref.load %arg1[%c56] : memref<72xf32, #tpu.memory_space<smem>>
    %310 = vector.broadcast %309 : f32 to vector<2x256xf32>
    %311 = arith.mulf %276, %310 : vector<2x256xf32>
    %312 = arith.addf %308, %311 : vector<2x256xf32>
    %c54 = arith.constant 54 : index
    %313 = memref.load %arg1[%c54] : memref<72xf32, #tpu.memory_space<smem>>
    %314 = vector.broadcast %313 : f32 to vector<2x256xf32>
    %315 = arith.mulf %280, %314 : vector<2x256xf32>
    %316 = arith.addf %312, %315 : vector<2x256xf32>
    %c67 = arith.constant 67 : index
    %317 = memref.load %arg1[%c67] : memref<72xf32, #tpu.memory_space<smem>>
    %318 = vector.broadcast %317 : f32 to vector<2x256xf32>
    %319 = arith.mulf %270, %318 : vector<2x256xf32>
    %320 = arith.addf %236, %319 : vector<2x256xf32>
    %c68 = arith.constant 68 : index
    %321 = memref.load %arg1[%c68] : memref<72xf32, #tpu.memory_space<smem>>
    %322 = vector.broadcast %321 : f32 to vector<2x256xf32>
    %323 = arith.mulf %270, %322 : vector<2x256xf32>
    %324 = arith.addf %244, %323 : vector<2x256xf32>
    %c66 = arith.constant 66 : index
    %325 = memref.load %arg1[%c66] : memref<72xf32, #tpu.memory_space<smem>>
    %326 = vector.broadcast %325 : f32 to vector<2x256xf32>
    %327 = arith.mulf %274, %326 : vector<2x256xf32>
    %328 = arith.addf %324, %327 : vector<2x256xf32>
    %c70 = arith.constant 70 : index
    %329 = memref.load %arg1[%c70] : memref<72xf32, #tpu.memory_space<smem>>
    %330 = vector.broadcast %329 : f32 to vector<2x256xf32>
    %331 = arith.mulf %270, %330 : vector<2x256xf32>
    %332 = arith.addf %252, %331 : vector<2x256xf32>
    %c64 = arith.constant 64 : index
    %333 = memref.load %arg1[%c64] : memref<72xf32, #tpu.memory_space<smem>>
    %334 = vector.broadcast %333 : f32 to vector<2x256xf32>
    %335 = arith.mulf %276, %334 : vector<2x256xf32>
    %336 = arith.addf %332, %335 : vector<2x256xf32>
    %c71 = arith.constant 71 : index
    %337 = memref.load %arg1[%c71] : memref<72xf32, #tpu.memory_space<smem>>
    %338 = vector.broadcast %337 : f32 to vector<2x256xf32>
    %339 = arith.mulf %270, %338 : vector<2x256xf32>
    %340 = arith.addf %268, %339 : vector<2x256xf32>
    %c69 = arith.constant 69 : index
    %341 = memref.load %arg1[%c69] : memref<72xf32, #tpu.memory_space<smem>>
    %342 = vector.broadcast %341 : f32 to vector<2x256xf32>
    %343 = arith.mulf %274, %342 : vector<2x256xf32>
    %344 = arith.addf %340, %343 : vector<2x256xf32>
    %c65 = arith.constant 65 : index
    %345 = memref.load %arg1[%c65] : memref<72xf32, #tpu.memory_space<smem>>
    %346 = vector.broadcast %345 : f32 to vector<2x256xf32>
    %347 = arith.mulf %276, %346 : vector<2x256xf32>
    %348 = arith.addf %344, %347 : vector<2x256xf32>
    %c63 = arith.constant 63 : index
    %349 = memref.load %arg1[%c63] : memref<72xf32, #tpu.memory_space<smem>>
    %350 = vector.broadcast %349 : f32 to vector<2x256xf32>
    %351 = arith.mulf %280, %350 : vector<2x256xf32>
    %352 = arith.addf %348, %351 : vector<2x256xf32>
    %c0_73 = arith.constant 0 : index
    %c0_74 = arith.constant 0 : index
    %c0_75 = arith.constant 0 : index
    %353 = vector.load %arg4[%c0_73, %c0_74, %c0_75] : memref<2x8x256xf32, #tpu.memory_space<vmem>>, vector<1x2x256xf32>
    %354 = vector.shape_cast %353 : vector<1x2x256xf32> to vector<2x256xf32>
    %355 = vector.shape_cast %284 : vector<2x256xf32> to vector<1x2x256xf32>
    tpu.vector_store %arg4[%c0_73, %c0_74, %c0_75], %355 {strides = array<i32>} : memref<2x8x256xf32, #tpu.memory_space<vmem>>, vector<1x2x256xf32>,
    %c0_76 = arith.constant 0 : index
    %c2_77 = arith.constant 2 : index
    %c0_78 = arith.constant 0 : index
    %356 = vector.load %arg4[%c0_76, %c2_77, %c0_78] : memref<2x8x256xf32, #tpu.memory_space<vmem>>, vector<1x2x256xf32>
    %357 = vector.shape_cast %356 : vector<1x2x256xf32> to vector<2x256xf32>
    %358 = vector.shape_cast %292 : vector<2x256xf32> to vector<1x2x256xf32>
    tpu.vector_store %arg4[%c0_76, %c2_77, %c0_78], %358 {strides = array<i32>} : memref<2x8x256xf32, #tpu.memory_space<vmem>>, vector<1x2x256xf32>,
    %c0_79 = arith.constant 0 : index
    %c4_80 = arith.constant 4 : index
    %c0_81 = arith.constant 0 : index
    %359 = vector.load %arg4[%c0_79, %c4_80, %c0_81] : memref<2x8x256xf32, #tpu.memory_space<vmem>>, vector<1x2x256xf32>
    %360 = vector.shape_cast %359 : vector<1x2x256xf32> to vector<2x256xf32>
    %361 = vector.shape_cast %300 : vector<2x256xf32> to vector<1x2x256xf32>
    tpu.vector_store %arg4[%c0_79, %c4_80, %c0_81], %361 {strides = array<i32>} : memref<2x8x256xf32, #tpu.memory_space<vmem>>, vector<1x2x256xf32>,
    %c0_82 = arith.constant 0 : index
    %c6_83 = arith.constant 6 : index
    %c0_84 = arith.constant 0 : index
    %362 = vector.load %arg4[%c0_82, %c6_83, %c0_84] : memref<2x8x256xf32, #tpu.memory_space<vmem>>, vector<1x2x256xf32>
    %363 = vector.shape_cast %362 : vector<1x2x256xf32> to vector<2x256xf32>
    %364 = vector.shape_cast %316 : vector<2x256xf32> to vector<1x2x256xf32>
    tpu.vector_store %arg4[%c0_82, %c6_83, %c0_84], %364 {strides = array<i32>} : memref<2x8x256xf32, #tpu.memory_space<vmem>>, vector<1x2x256xf32>,
    %c0_85 = arith.constant 0 : index
    %c0_86 = arith.constant 0 : index
    %c0_87 = arith.constant 0 : index
    %365 = vector.load %arg4[%c0_85, %c0_86, %c0_87] : memref<2x8x256xf32, #tpu.memory_space<vmem>>, vector<1x8x256xf32>
    %366 = vector.shape_cast %365 : vector<1x8x256xf32> to vector<8x256xf32>
    %367 = vector.shape_cast %366 : vector<8x256xf32> to vector<1x8x256xf32>
    %cst_88 = arith.constant dense<0.000000e+00> : vector<1xf32>
    %368 = vector.multi_reduction <add>, %367, %cst_88 [1, 2] : vector<1x8x256xf32> to vector<1xf32>
    %369 = vector.shape_cast %368 : vector<1xf32> to vector<1x1x1xf32>
    %370 = vector.extract %369[0, 0, 0] : f32 from vector<1x1x1xf32>
    %371 = arith.mulf %366, %366 : vector<8x256xf32>
    %372 = vector.shape_cast %371 : vector<8x256xf32> to vector<1x8x256xf32>
    %cst_89 = arith.constant dense<0.000000e+00> : vector<1xf32>
    %373 = vector.multi_reduction <add>, %372, %cst_89 [1, 2] : vector<1x8x256xf32> to vector<1xf32>
    %374 = vector.shape_cast %373 : vector<1xf32> to vector<1x1x1xf32>
    %375 = vector.extract %374[0, 0, 0] : f32 from vector<1x1x1xf32>
    %cst_90 = arith.constant 4.8828125E-4 : f32
    %376 = arith.mulf %370, %cst_90 : f32
    %cst_91 = arith.constant 4.8828125E-4 : f32
    %377 = arith.mulf %375, %cst_91 : f32
    %378 = arith.mulf %376, %376 : f32
    %379 = arith.subf %377, %378 : f32
    %cst_92 = arith.constant 0.000000e+00 : f32
    %380 = arith.maximumf %379, %cst_92 : f32
    %c0_93 = arith.constant 0 : index
    %381 = memref.load %arg2[%c0_93] : memref<2xf32, #tpu.memory_space<smem>>
    %cst_94 = arith.constant 9.99999974E-6 : f32
    %382 = arith.addf %380, %cst_94 : f32
    %383 = math.rsqrt %382 : f32
    %384 = arith.mulf %381, %383 : f32
    %c0_95 = arith.constant 0 : index
    %385 = memref.load %arg3[%c0_95] : memref<2xf32, #tpu.memory_space<smem>>
    %386 = arith.mulf %376, %384 : f32
    %387 = arith.subf %385, %386 : f32
    %388 = vector.broadcast %384 : f32 to vector<8x256xf32>
    %389 = arith.mulf %366, %388 : vector<8x256xf32>
    %390 = vector.broadcast %387 : f32 to vector<8x256xf32>
    %391 = arith.addf %389, %390 : vector<8x256xf32>
    %cst_96 = arith.constant 0.000000e+00 : f32
    %392 = vector.broadcast %cst_96 : f32 to vector<8x256xf32>
    %393 = arith.maximumf %391, %392 : vector<8x256xf32>
    %c0_97 = arith.constant 0 : index
    %c0_98 = arith.constant 0 : index
    %c0_99 = arith.constant 0 : index
    %394 = vector.load %arg4[%c0_97, %c0_98, %c0_99] : memref<2x8x256xf32, #tpu.memory_space<vmem>>, vector<1x8x256xf32>
    %395 = vector.shape_cast %394 : vector<1x8x256xf32> to vector<8x256xf32>
    %396 = vector.shape_cast %393 : vector<8x256xf32> to vector<1x8x256xf32>
    tpu.vector_store %arg4[%c0_97, %c0_98, %c0_99], %396 {strides = array<i32>} : memref<2x8x256xf32, #tpu.memory_space<vmem>>, vector<1x8x256xf32>,
    %c1_100 = arith.constant 1 : index
    %c0_101 = arith.constant 0 : index
    %c0_102 = arith.constant 0 : index
    %397 = vector.load %arg4[%c1_100, %c0_101, %c0_102] : memref<2x8x256xf32, #tpu.memory_space<vmem>>, vector<1x2x256xf32>
    %398 = vector.shape_cast %397 : vector<1x2x256xf32> to vector<2x256xf32>
    %399 = vector.shape_cast %320 : vector<2x256xf32> to vector<1x2x256xf32>
    tpu.vector_store %arg4[%c1_100, %c0_101, %c0_102], %399 {strides = array<i32>} : memref<2x8x256xf32, #tpu.memory_space<vmem>>, vector<1x2x256xf32>,
    %c1_103 = arith.constant 1 : index
    %c2_104 = arith.constant 2 : index
    %c0_105 = arith.constant 0 : index
    %400 = vector.load %arg4[%c1_103, %c2_104, %c0_105] : memref<2x8x256xf32, #tpu.memory_space<vmem>>, vector<1x2x256xf32>
    %401 = vector.shape_cast %400 : vector<1x2x256xf32> to vector<2x256xf32>
    %402 = vector.shape_cast %328 : vector<2x256xf32> to vector<1x2x256xf32>
    tpu.vector_store %arg4[%c1_103, %c2_104, %c0_105], %402 {strides = array<i32>} : memref<2x8x256xf32, #tpu.memory_space<vmem>>, vector<1x2x256xf32>,
    %c1_106 = arith.constant 1 : index
    %c4_107 = arith.constant 4 : index
    %c0_108 = arith.constant 0 : index
    %403 = vector.load %arg4[%c1_106, %c4_107, %c0_108] : memref<2x8x256xf32, #tpu.memory_space<vmem>>, vector<1x2x256xf32>
    %404 = vector.shape_cast %403 : vector<1x2x256xf32> to vector<2x256xf32>
    %405 = vector.shape_cast %336 : vector<2x256xf32> to vector<1x2x256xf32>
    tpu.vector_store %arg4[%c1_106, %c4_107, %c0_108], %405 {strides = array<i32>} : memref<2x8x256xf32, #tpu.memory_space<vmem>>, vector<1x2x256xf32>,
    %c1_109 = arith.constant 1 : index
    %c6_110 = arith.constant 6 : index
    %c0_111 = arith.constant 0 : index
    %406 = vector.load %arg4[%c1_109, %c6_110, %c0_111] : memref<2x8x256xf32, #tpu.memory_space<vmem>>, vector<1x2x256xf32>
    %407 = vector.shape_cast %406 : vector<1x2x256xf32> to vector<2x256xf32>
    %408 = vector.shape_cast %352 : vector<2x256xf32> to vector<1x2x256xf32>
    tpu.vector_store %arg4[%c1_109, %c6_110, %c0_111], %408 {strides = array<i32>} : memref<2x8x256xf32, #tpu.memory_space<vmem>>, vector<1x2x256xf32>,
    %c1_112 = arith.constant 1 : index
    %c0_113 = arith.constant 0 : index
    %c0_114 = arith.constant 0 : index
    %409 = vector.load %arg4[%c1_112, %c0_113, %c0_114] : memref<2x8x256xf32, #tpu.memory_space<vmem>>, vector<1x8x256xf32>
    %410 = vector.shape_cast %409 : vector<1x8x256xf32> to vector<8x256xf32>
    %411 = vector.shape_cast %410 : vector<8x256xf32> to vector<1x8x256xf32>
    %cst_115 = arith.constant dense<0.000000e+00> : vector<1xf32>
    %412 = vector.multi_reduction <add>, %411, %cst_115 [1, 2] : vector<1x8x256xf32> to vector<1xf32>
    %413 = vector.shape_cast %412 : vector<1xf32> to vector<1x1x1xf32>
    %414 = vector.extract %413[0, 0, 0] : f32 from vector<1x1x1xf32>
    %415 = arith.mulf %410, %410 : vector<8x256xf32>
    %416 = vector.shape_cast %415 : vector<8x256xf32> to vector<1x8x256xf32>
    %cst_116 = arith.constant dense<0.000000e+00> : vector<1xf32>
    %417 = vector.multi_reduction <add>, %416, %cst_116 [1, 2] : vector<1x8x256xf32> to vector<1xf32>
    %418 = vector.shape_cast %417 : vector<1xf32> to vector<1x1x1xf32>
    %419 = vector.extract %418[0, 0, 0] : f32 from vector<1x1x1xf32>
    %cst_117 = arith.constant 4.8828125E-4 : f32
    %420 = arith.mulf %414, %cst_117 : f32
    %cst_118 = arith.constant 4.8828125E-4 : f32
    %421 = arith.mulf %419, %cst_118 : f32
    %422 = arith.mulf %420, %420 : f32
    %423 = arith.subf %421, %422 : f32
    %cst_119 = arith.constant 0.000000e+00 : f32
    %424 = arith.maximumf %423, %cst_119 : f32
    %c1_120 = arith.constant 1 : index
    %425 = memref.load %arg2[%c1_120] : memref<2xf32, #tpu.memory_space<smem>>
    %cst_121 = arith.constant 9.99999974E-6 : f32
    %426 = arith.addf %424, %cst_121 : f32
    %427 = math.rsqrt %426 : f32
    %428 = arith.mulf %425, %427 : f32
    %c1_122 = arith.constant 1 : index
    %429 = memref.load %arg3[%c1_122] : memref<2xf32, #tpu.memory_space<smem>>
    %430 = arith.mulf %420, %428 : f32
    %431 = arith.subf %429, %430 : f32
    %432 = vector.broadcast %428 : f32 to vector<8x256xf32>
    %433 = arith.mulf %410, %432 : vector<8x256xf32>
    %434 = vector.broadcast %431 : f32 to vector<8x256xf32>
    %435 = arith.addf %433, %434 : vector<8x256xf32>
    %cst_123 = arith.constant 0.000000e+00 : f32
    %436 = vector.broadcast %cst_123 : f32 to vector<8x256xf32>
    %437 = arith.maximumf %435, %436 : vector<8x256xf32>
    %c1_124 = arith.constant 1 : index
    %c0_125 = arith.constant 0 : index
    %c0_126 = arith.constant 0 : index
    %438 = vector.load %arg4[%c1_124, %c0_125, %c0_126] : memref<2x8x256xf32, #tpu.memory_space<vmem>>, vector<1x8x256xf32>
    %439 = vector.shape_cast %438 : vector<1x8x256xf32> to vector<8x256xf32>
    %440 = vector.shape_cast %437 : vector<8x256xf32> to vector<1x8x256xf32>
    tpu.vector_store %arg4[%c1_124, %c0_125, %c0_126], %440 {strides = array<i32>} : memref<2x8x256xf32, #tpu.memory_space<vmem>>, vector<1x8x256xf32>,
    return
  }
}

</mosaic_0001>

<llo_original>
// kernel: conv2d_expand_forward.1
$region0: #{conv2d_expand_forward.1}
  #allocation0 [shape = 'u32[]', space=smem, size = 0x4, offset = 0x4, fixed_abs, tag = 'smem constant byte address 0x4 - core index']
  #allocation1 [shape = 'u32[144,128]{1,0:T(1,128)}', space=vmem, size = 0x12000, scoped, tag = 'internal scratch']
  #allocation2 [shape = 'f32[2,4,384]{2,1,0:T(4,128)}', space=vmem, size = 0x3000, scoped, tag = 'scratch operand']
  %s0 = inlined_call_operand.vmem [shape: f32[2,4,256], index: 0, kind: input, shape index: {}]
  %s1 = inlined_call_operand.vmem [shape: f32[72], index: 1, kind: input, shape index: {}]
  %s2 = inlined_call_operand.vmem [shape: f32[2], index: 2, kind: input, shape index: {}]
  %s3 = inlined_call_operand.vmem [shape: f32[2], index: 3, kind: input, shape index: {}]
  %s4 = inlined_call_operand.vmem [shape: f32[2,8,256], index: 4, kind: output, shape index: {}]
  %s5 = sld [smem:[#allocation0]]
  $region38: #{conv2d_expand_forward.1} parent=0
    _
  %s7 = ssub.s32 1, %s5
  %s8 = scalar_select 0, %s7, %s5
  $region1: #{conv2d_expand_forward.1} parent=0
    #allocation3 [shape = 'u8[512]{0}', space=smem, size = 0x200, scoped, tag = 'input window, operand 1, single buffered']
    #allocation4 [shape = 's32[1]{0}', space=sflag, size = 0x4, scoped, tag = 'scoped memory for conv2d_expand_forward.1']
    #allocation5 [shape = 'u8[512]{0}', space=smem, size = 0x200, scoped, tag = 'input window, operand 2, single buffered']
    #allocation6 [shape = 's32[1]{0}', space=sflag, size = 0x4, scoped, tag = 'scoped memory for conv2d_expand_forward.1']
    #allocation7 [shape = 'u8[512]{0}', space=smem, size = 0x200, scoped, tag = 'input window, operand 3, single buffered']
    %9 = vsyncpa [#allocation4], 0
    %10 = vsyncpa [#allocation6], 0
    // Predicated region
    $region2: #{conv2d_expand_forward.1} parent=1 // pred_check
      _
    $region3: #{conv2d_expand_forward.1} parent=1 // pred_check_branch
      %12 = sbr.rel (0) target = $region5
    $region4: #{conv2d_expand_forward.1} parent=1 // pred_region
      _
    $region5: #{conv2d_expand_forward.1} parent=1 // pred_fallthru
      _
    // Predicated region
    $region6: #{conv2d_expand_forward.1} parent=1 // pred_check
      _
    $region7: #{conv2d_expand_forward.1} parent=1 // pred_check_branch
      %14 = sbr.rel (0) target = $region9
    $region8: #{conv2d_expand_forward.1} parent=1 // pred_region
      %s16 = ssub.s32 16, 16
      %17 = vsyncadd [#allocation4], %s16
      %s19 = sshll.u32 %s1, 4
      %s20 = int_to_ptr.vmem [resolvable:$true] %s19
      %22 = dma.vmem_to_smem %s20, 16, [#allocation3], [#allocation4]
    $region9: #{conv2d_expand_forward.1} parent=1 // pred_fallthru
      _
    // Predicated region
    $region10: #{conv2d_expand_forward.1} parent=1 // pred_check
      _
    $region11: #{conv2d_expand_forward.1} parent=1 // pred_check_branch
      %24 = sbr.rel (0) target = $region13
    $region12: #{conv2d_expand_forward.1} parent=1 // pred_region
      %s26 = ssub.s32 16, 16
      %27 = vsyncadd [#allocation6], %s26
      %s29 = sshll.u32 %s2, 4
      %s30 = int_to_ptr.vmem [resolvable:$true] %s29
      %32 = dma.vmem_to_smem %s30, 16, [#allocation5], [#allocation6]
    $region13: #{conv2d_expand_forward.1} parent=1 // pred_fallthru
      _
    // Predicated region
    $region14: #{conv2d_expand_forward.1} parent=1 // pred_check
      _
    $region15: #{conv2d_expand_forward.1} parent=1 // pred_check_branch
      %34 = sbr.rel (0) target = $region17
    $region16: #{conv2d_expand_forward.1} parent=1 // pred_region
      %s36 = ssub.s32 16, 16
      %37 = vsyncadd [#allocation6], %s36
      %s39 = sshll.u32 %s3, 4
      %s40 = int_to_ptr.vmem [resolvable:$true] %s39
      %42 = dma.vmem_to_smem %s40, 16, [#allocation7], [#allocation6]
    $region17: #{conv2d_expand_forward.1} parent=1 // pred_fallthru
      _
    // Predicated region
    $region18: #{conv2d_expand_forward.1} parent=1 // pred_check
      _
    $region19: #{conv2d_expand_forward.1} parent=1 // pred_check_branch
      %44 = sbr.rel (0) target = $region21
    $region20: #{conv2d_expand_forward.1} parent=1 // pred_region
      %45 = dma.done [#allocation4], 16
    $region21: #{conv2d_expand_forward.1} parent=1 // pred_fallthru
      _
    // Predicated region
    $region22: #{conv2d_expand_forward.1} parent=1 // pred_check
      _
    $region23: #{conv2d_expand_forward.1} parent=1 // pred_check_branch
      %47 = sbr.rel (0) target = $region25
    $region24: #{conv2d_expand_forward.1} parent=1 // pred_region
      %48 = dma.done [#allocation6], 16
    $region25: #{conv2d_expand_forward.1} parent=1 // pred_fallthru
      _
    // Predicated region
    $region26: #{conv2d_expand_forward.1} parent=1 // pred_check
      _
    $region27: #{conv2d_expand_forward.1} parent=1 // pred_check_branch
      %50 = sbr.rel (0) target = $region29
    $region28: #{conv2d_expand_forward.1} parent=1 // pred_region
      %51 = dma.done [#allocation6], 16
    $region29: #{conv2d_expand_forward.1} parent=1 // pred_fallthru
      _
    %52 = sfence
    %53 = vst [vmem:[#allocation2 + $0x8] sm:$0xf] 0.0
    %54 = vst [vmem:[#allocation2 + $0x14] sm:$0xf] 0.0
    %v55 = vld [vmem:[%s0] sm:$0xff]
    %v56 = vld [vmem:[%s0 + $0x8] sm:$0xff]
    %57 = vst [vmem:[#allocation2] sm:$0xff] %v55
    %58 = vst [vmem:[#allocation2 + $0xc] sm:$0xff] %v56
    %v59 = vlaneseq
    %v60 = vand.u32 %v59, 127
    %v61 = vadd.s32 %v60, 128
    %v62 = vand.u32 %v60, 15
    %v63 = vand.u32 %v61, 15
    %vm64 = vcmp.ne.s32.totalorder %v62, 15
    %vm65 = vcmp.ne.s32.totalorder %v63, 15
    %v66 = vld [vmem:[#allocation2] ss:$4 sm:$0x3]
    %s67 = scalar_lea.vmem [#allocation2], 12
    %v68 = vld [vmem:[%s67] ss:$4 sm:$0x3]
    %v69 = vld [vmem:[#allocation2] ss:$4 sm:$0x7]
    %s70 = scalar_lea.vmem [#allocation2], 12
    %v71 = vld [vmem:[%s70] ss:$4 sm:$0x7]
    %v74 = vcombine.low %v69, %v71
    %v76 = vunpack.c.l.s4 1966171168
    %v77 = vunpack.c.0.s8 %v76
    %v78 = vlaneseq
    %v79 = vshrl.u32 %v78, 7
    %v80 = vsub.s32 %v77, %v79
    %v81 = vrot.slane %v74, %v80
    %v82 = vcombine.high %v81, %v81
    %v84 = vunpack.c.l.s4 1966171168
    %v85 = vunpack.c.0.s8 %v84
    %v86 = vlaneseq
    %v87 = vshrl.u32 %v86, 7
    %v88 = vsub.s32 %v85, %v87
    %v89 = vrot.slane %v81, %v88
    %v91 = vunpack.c.l.s4 1966171168
    %v92 = vunpack.c.0.s8 %v91
    %v93 = vlaneseq
    %v94 = vshrl.u32 %v93, 7
    %v95 = vsub.s32 %v92, %v94
    %v96 = vrot.slane %v82, %v95
    %v97 = vcombine.high %v89, %v89
    %98 = vrot.lane.b32.xlu0 %v89, 127
    %v99 = vpop.permute.xlu0 %98
    %100 = vrot.lane.b32.xlu0 %v96, 127
    %v101 = vpop.permute.xlu0 %100
    %102 = vrot.lane.b32.xlu0 %v97, 127
    %v103 = vpop.permute.xlu0 %102
    %vm104 = vcmask 1039360
    %v105 = vsel %vm104, %v99, %v101
    %v106 = vsel %vm104, %v101, %v103
    %v109 = vsel %vm64, %v105, 0.0
    %v110 = vsel %vm65, %v106, 0.0
    %111 = vrot.lane.b32.xlu0 %v89, 111
    %v112 = vpop.permute.xlu0 %111
    %113 = vrot.lane.b32.xlu0 %v96, 111
    %v114 = vpop.permute.xlu0 %113
    %115 = vrot.lane.b32.xlu0 %v97, 111
    %v116 = vpop.permute.xlu0 %115
    %vm117 = vcmask 908288
    %v118 = vsel %vm117, %v112, %v114
    %v119 = vsel %vm117, %v114, %v116
    %v122 = vsel %vm64, %v118, 0.0
    %v123 = vsel %vm65, %v119, 0.0
    %s124 = sld [smem:[#allocation3 + $0x4]]
    %v125 = vstv %s124
    %v126 = vmul.f32 %v66, %v125
    %v127 = vmul.f32 %v68, %v125
    %v128 = vadd.f32 %v126, 0.0
    %v129 = vadd.f32 %v127, 0.0
    %s130 = sld [smem:[#allocation3 + $0x5]]
    %v131 = vstv %s130
    %v132 = vmul.f32 %v66, %v131
    %v133 = vmul.f32 %v68, %v131
    %v134 = vadd.f32 %v132, 0.0
    %v135 = vadd.f32 %v133, 0.0
    %s136 = sld [smem:[#allocation3 + $0x3]]
    %v137 = vstv %s136
    %v138 = vmul.f32 %v109, %v137
    %v139 = vmul.f32 %v110, %v137
    %v142 = vcombine.low %v138, %v139
    %v144 = vunpack.c.l.s4 1966171168
    %v145 = vunpack.c.0.s8 %v144
    %v146 = vlaneseq
    %v147 = vshrl.u32 %v146, 7
    %v148 = vsub.s32 %v145, %v147
    %v149 = vrot.slane %v142, %v148
    %v150 = vcombine.high %v149, %v149
    %v152 = vunpack.c.l.s4 1966171168
    %v153 = vunpack.c.0.s8 %v152
    %v154 = vlaneseq
    %v155 = vshrl.u32 %v154, 7
    %v156 = vsub.s32 %v153, %v155
    %v157 = vrot.slane %v149, %v156
    %v159 = vunpack.c.l.s4 1966171168
    %v160 = vunpack.c.0.s8 %v159
    %v161 = vlaneseq
    %v162 = vshrl.u32 %v161, 7
    %v163 = vsub.s32 %v160, %v162
    %v164 = vrot.slane %v150, %v163
    %v167 = vadd.f32 %v134, %v157
    %v168 = vadd.f32 %v135, %v164
    %s169 = sld [smem:[#allocation3 + $0x7]]
    %v170 = vstv %s169
    %v171 = vmul.f32 %v66, %v170
    %v172 = vmul.f32 %v68, %v170
    %v173 = vadd.f32 %v171, 0.0
    %v174 = vadd.f32 %v172, 0.0
    %s175 = sld [smem:[#allocation3 + $0x1]]
    %v176 = vstv %s175
    %v177 = vmul.f32 %v69, %v176
    %v178 = vmul.f32 %v71, %v176
    %181 = vrot.lane.b32.xlu0 %v177, 112
    %v182 = vpop.permute.xlu0 %181
    %183 = vrot.lane.b32.xlu0 %v178, 112
    %v184 = vpop.permute.xlu0 %183
    %v185 = vrot.slane %v182, 1
    %v186 = vrot.slane %v184, 1
    %vm187 = vcmask 916480
    %v188 = vsel %vm187, %v182, %v185
    %v189 = vsel %vm187, %v184, %v186
    %v192 = vadd.f32 %v173, %v188
    %v193 = vadd.f32 %v174, %v189
    %s194 = sld [smem:[#allocation3 + $0x8]]
    %v195 = vstv %s194
    %v196 = vmul.f32 %v66, %v195
    %v197 = vmul.f32 %v68, %v195
    %v198 = vadd.f32 %v196, 0.0
    %v199 = vadd.f32 %v197, 0.0
    %s200 = sld [smem:[#allocation3 + $0x6]]
    %v201 = vstv %s200
    %v202 = vmul.f32 %v109, %v201
    %v203 = vmul.f32 %v110, %v201
    %v206 = vcombine.low %v202, %v203
    %v208 = vunpack.c.l.s4 1966171168
    %v209 = vunpack.c.0.s8 %v208
    %v210 = vlaneseq
    %v211 = vshrl.u32 %v210, 7
    %v212 = vsub.s32 %v209, %v211
    %v213 = vrot.slane %v206, %v212
    %v214 = vcombine.high %v213, %v213
    %v216 = vunpack.c.l.s4 1966171168
    %v217 = vunpack.c.0.s8 %v216
    %v218 = vlaneseq
    %v219 = vshrl.u32 %v218, 7
    %v220 = vsub.s32 %v217, %v219
    %v221 = vrot.slane %v213, %v220
    %v223 = vunpack.c.l.s4 1966171168
    %v224 = vunpack.c.0.s8 %v223
    %v225 = vlaneseq
    %v226 = vshrl.u32 %v225, 7
    %v227 = vsub.s32 %v224, %v226
    %v228 = vrot.slane %v214, %v227
    %v231 = vadd.f32 %v198, %v221
    %v232 = vadd.f32 %v199, %v228
    %s233 = sld [smem:[#allocation3 + $0x2]]
    %v234 = vstv %s233
    %v235 = vmul.f32 %v69, %v234
    %v236 = vmul.f32 %v71, %v234
    %239 = vrot.lane.b32.xlu0 %v235, 112
    %v240 = vpop.permute.xlu0 %239
    %241 = vrot.lane.b32.xlu0 %v236, 112
    %v242 = vpop.permute.xlu0 %241
    %v243 = vrot.slane %v240, 1
    %v244 = vrot.slane %v242, 1
    %v245 = vsel %vm187, %v240, %v243
    %v246 = vsel %vm187, %v242, %v244
    %v249 = vadd.f32 %v231, %v245
    %v250 = vadd.f32 %v232, %v246
    %s251 = sld [smem:[#allocation3]]
    %v252 = vstv %s251
    %v253 = vmul.f32 %v122, %v252
    %v254 = vmul.f32 %v123, %v252
    %v257 = vcombine.low %v253, %v254
    %v259 = vunpack.c.l.s4 1966171168
    %v260 = vunpack.c.0.s8 %v259
    %v261 = vlaneseq
    %v262 = vshrl.u32 %v261, 7
    %v263 = vsub.s32 %v260, %v262
    %v264 = vrot.slane %v257, %v263
    %v265 = vcombine.high %v264, %v264
    %v267 = vunpack.c.l.s4 1966171168
    %v268 = vunpack.c.0.s8 %v267
    %v269 = vlaneseq
    %v270 = vshrl.u32 %v269, 7
    %v271 = vsub.s32 %v268, %v270
    %v272 = vrot.slane %v264, %v271
    %v274 = vunpack.c.l.s4 1966171168
    %v275 = vunpack.c.0.s8 %v274
    %v276 = vlaneseq
    %v277 = vshrl.u32 %v276, 7
    %v278 = vsub.s32 %v275, %v277
    %v279 = vrot.slane %v265, %v278
    %v282 = vadd.f32 %v249, %v272
    %v283 = vadd.f32 %v250, %v279
    %s284 = sld [smem:[#allocation3 + $0xd]]
    %v285 = vstv %s284
    %v286 = vmul.f32 %v66, %v285
    %v287 = vmul.f32 %v68, %v285
    %v288 = vadd.f32 %v286, 0.0
    %v289 = vadd.f32 %v287, 0.0
    %s290 = sld [smem:[#allocation3 + $0xe]]
    %v291 = vstv %s290
    %v292 = vmul.f32 %v66, %v291
    %v293 = vmul.f32 %v68, %v291
    %v294 = vadd.f32 %v292, 0.0
    %v295 = vadd.f32 %v293, 0.0
    %s296 = sld [smem:[#allocation3 + $0xc]]
    %v297 = vstv %s296
    %v298 = vmul.f32 %v109, %v297
    %v299 = vmul.f32 %v110, %v297
    %v302 = vcombine.low %v298, %v299
    %v304 = vunpack.c.l.s4 1966171168
    %v305 = vunpack.c.0.s8 %v304
    %v306 = vlaneseq
    %v307 = vshrl.u32 %v306, 7
    %v308 = vsub.s32 %v305, %v307
    %v309 = vrot.slane %v302, %v308
    %v310 = vcombine.high %v309, %v309
    %v312 = vunpack.c.l.s4 1966171168
    %v313 = vunpack.c.0.s8 %v312
    %v314 = vlaneseq
    %v315 = vshrl.u32 %v314, 7
    %v316 = vsub.s32 %v313, %v315
    %v317 = vrot.slane %v309, %v316
    %v319 = vunpack.c.l.s4 1966171168
    %v320 = vunpack.c.0.s8 %v319
    %v321 = vlaneseq
    %v322 = vshrl.u32 %v321, 7
    %v323 = vsub.s32 %v320, %v322
    %v324 = vrot.slane %v310, %v323
    %v327 = vadd.f32 %v294, %v317
    %v328 = vadd.f32 %v295, %v324
    %s329 = sld [smem:[#allocation3 + $0x10]]
    %v330 = vstv %s329
    %v331 = vmul.f32 %v66, %v330
    %v332 = vmul.f32 %v68, %v330
    %v333 = vadd.f32 %v331, 0.0
    %v334 = vadd.f32 %v332, 0.0
    %s335 = sld [smem:[#allocation3 + $0xa]]
    %v336 = vstv %s335
    %v337 = vmul.f32 %v69, %v336
    %v338 = vmul.f32 %v71, %v336
    %341 = vrot.lane.b32.xlu0 %v337, 112
    %v342 = vpop.permute.xlu0 %341
    %343 = vrot.lane.b32.xlu0 %v338, 112
    %v344 = vpop.permute.xlu0 %343
    %v345 = vrot.slane %v342, 1
    %v346 = vrot.slane %v344, 1
    %v347 = vsel %vm187, %v342, %v345
    %v348 = vsel %vm187, %v344, %v346
    %v351 = vadd.f32 %v333, %v347
    %v352 = vadd.f32 %v334, %v348
    %s353 = sld [smem:[#allocation3 + $0x11]]
    %v354 = vstv %s353
    %v355 = vmul.f32 %v66, %v354
    %v356 = vmul.f32 %v68, %v354
    %v357 = vadd.f32 %v355, 0.0
    %v358 = vadd.f32 %v356, 0.0
    %s359 = sld [smem:[#allocation3 + $0xf]]
    %v360 = vstv %s359
    %v361 = vmul.f32 %v109, %v360
    %v362 = vmul.f32 %v110, %v360
    %v365 = vcombine.low %v361, %v362
    %v367 = vunpack.c.l.s4 1966171168
    %v368 = vunpack.c.0.s8 %v367
    %v369 = vlaneseq
    %v370 = vshrl.u32 %v369, 7
    %v371 = vsub.s32 %v368, %v370
    %v372 = vrot.slane %v365, %v371
    %v373 = vcombine.high %v372, %v372
    %v375 = vunpack.c.l.s4 1966171168
    %v376 = vunpack.c.0.s8 %v375
    %v377 = vlaneseq
    %v378 = vshrl.u32 %v377, 7
    %v379 = vsub.s32 %v376, %v378
    %v380 = vrot.slane %v372, %v379
    %v382 = vunpack.c.l.s4 1966171168
    %v383 = vunpack.c.0.s8 %v382
    %v384 = vlaneseq
    %v385 = vshrl.u32 %v384, 7
    %v386 = vsub.s32 %v383, %v385
    %v387 = vrot.slane %v373, %v386
    %v390 = vadd.f32 %v357, %v380
    %v391 = vadd.f32 %v358, %v387
    %s392 = sld [smem:[#allocation3 + $0xb]]
    %v393 = vstv %s392
    %v394 = vmul.f32 %v69, %v393
    %v395 = vmul.f32 %v71, %v393
    %398 = vrot.lane.b32.xlu0 %v394, 112
    %v399 = vpop.permute.xlu0 %398
    %400 = vrot.lane.b32.xlu0 %v395, 112
    %v401 = vpop.permute.xlu0 %400
    %v402 = vrot.slane %v399, 1
    %v403 = vrot.slane %v401, 1
    %v404 = vsel %vm187, %v399, %v402
    %v405 = vsel %vm187, %v401, %v403
    %v408 = vadd.f32 %v390, %v404
    %v409 = vadd.f32 %v391, %v405
    %s410 = sld [smem:[#allocation3 + $0x9]]
    %v411 = vstv %s410
    %v412 = vmul.f32 %v122, %v411
    %v413 = vmul.f32 %v123, %v411
    %v416 = vcombine.low %v412, %v413
    %v418 = vunpack.c.l.s4 1966171168
    %v419 = vunpack.c.0.s8 %v418
    %v420 = vlaneseq
    %v421 = vshrl.u32 %v420, 7
    %v422 = vsub.s32 %v419, %v421
    %v423 = vrot.slane %v416, %v422
    %v424 = vcombine.high %v423, %v423
    %v426 = vunpack.c.l.s4 1966171168
    %v427 = vunpack.c.0.s8 %v426
    %v428 = vlaneseq
    %v429 = vshrl.u32 %v428, 7
    %v430 = vsub.s32 %v427, %v429
    %v431 = vrot.slane %v423, %v430
    %v433 = vunpack.c.l.s4 1966171168
    %v434 = vunpack.c.0.s8 %v433
    %v435 = vlaneseq
    %v436 = vshrl.u32 %v435, 7
    %v437 = vsub.s32 %v434, %v436
    %v438 = vrot.slane %v424, %v437
    %v441 = vadd.f32 %v408, %v431
    %v442 = vadd.f32 %v409, %v438
    %s443 = scalar_lea.vmem [#allocation2], 1
    %v444 = vld [vmem:[%s443] ss:$4 sm:$0x3]
    %s445 = scalar_lea.vmem [#allocation2], 13
    %v446 = vld [vmem:[%s445] ss:$4 sm:$0x3]
    %s447 = scalar_lea.vmem [#allocation2], 1
    %v448 = vld [vmem:[%s447] ss:$4 sm:$0x7]
    %s449 = scalar_lea.vmem [#allocation2], 13
    %v450 = vld [vmem:[%s449] ss:$4 sm:$0x7]
    %v453 = vcombine.low %v448, %v450
    %v455 = vunpack.c.l.s4 1966171168
    %v456 = vunpack.c.0.s8 %v455
    %v457 = vlaneseq
    %v458 = vshrl.u32 %v457, 7
    %v459 = vsub.s32 %v456, %v458
    %v460 = vrot.slane %v453, %v459
    %v461 = vcombine.high %v460, %v460
    %v463 = vunpack.c.l.s4 1966171168
    %v464 = vunpack.c.0.s8 %v463
    %v465 = vlaneseq
    %v466 = vshrl.u32 %v465, 7
    %v467 = vsub.s32 %v464, %v466
    %v468 = vrot.slane %v460, %v467
    %v470 = vunpack.c.l.s4 1966171168
    %v471 = vunpack.c.0.s8 %v470
    %v472 = vlaneseq
    %v473 = vshrl.u32 %v472, 7
    %v474 = vsub.s32 %v471, %v473
    %v475 = vrot.slane %v461, %v474
    %v476 = vcombine.high %v468, %v468
    %477 = vrot.lane.b32.xlu0 %v468, 127
    %v478 = vpop.permute.xlu0 %477
    %479 = vrot.lane.b32.xlu0 %v475, 127
    %v480 = vpop.permute.xlu0 %479
    %481 = vrot.lane.b32.xlu0 %v476, 127
    %v482 = vpop.permute.xlu0 %481
    %v483 = vsel %vm104, %v478, %v480
    %v484 = vsel %vm104, %v480, %v482
    %v487 = vsel %vm64, %v483, 0.0
    %v488 = vsel %vm65, %v484, 0.0
    %489 = vrot.lane.b32.xlu0 %v468, 111
    %v490 = vpop.permute.xlu0 %489
    %491 = vrot.lane.b32.xlu0 %v475, 111
    %v492 = vpop.permute.xlu0 %491
    %493 = vrot.lane.b32.xlu0 %v476, 111
    %v494 = vpop.permute.xlu0 %493
    %v495 = vsel %vm117, %v490, %v492
    %v496 = vsel %vm117, %v492, %v494
    %v499 = vsel %vm64, %v495, 0.0
    %v500 = vsel %vm65, %v496, 0.0
    %s501 = sld [smem:[#allocation3 + $0x16]]
    %v502 = vstv %s501
    %v503 = vmul.f32 %v444, %v502
    %v504 = vmul.f32 %v446, %v502
    %v505 = vadd.f32 %v128, %v503
    %v506 = vadd.f32 %v129, %v504
    %s507 = sld [smem:[#allocation3 + $0x17]]
    %v508 = vstv %s507
    %v509 = vmul.f32 %v444, %v508
    %v510 = vmul.f32 %v446, %v508
    %v511 = vadd.f32 %v167, %v509
    %v512 = vadd.f32 %v168, %v510
    %s513 = sld [smem:[#allocation3 + $0x15]]
    %v514 = vstv %s513
    %v515 = vmul.f32 %v487, %v514
    %v516 = vmul.f32 %v488, %v514
    %v519 = vcombine.low %v515, %v516
    %v521 = vunpack.c.l.s4 1966171168
    %v522 = vunpack.c.0.s8 %v521
    %v523 = vlaneseq
    %v524 = vshrl.u32 %v523, 7
    %v525 = vsub.s32 %v522, %v524
    %v526 = vrot.slane %v519, %v525
    %v527 = vcombine.high %v526, %v526
    %v529 = vunpack.c.l.s4 1966171168
    %v530 = vunpack.c.0.s8 %v529
    %v531 = vlaneseq
    %v532 = vshrl.u32 %v531, 7
    %v533 = vsub.s32 %v530, %v532
    %v534 = vrot.slane %v526, %v533
    %v536 = vunpack.c.l.s4 1966171168
    %v537 = vunpack.c.0.s8 %v536
    %v538 = vlaneseq
    %v539 = vshrl.u32 %v538, 7
    %v540 = vsub.s32 %v537, %v539
    %v541 = vrot.slane %v527, %v540
    %v544 = vadd.f32 %v511, %v534
    %v545 = vadd.f32 %v512, %v541
    %s546 = sld [smem:[#allocation3 + $0x19]]
    %v547 = vstv %s546
    %v548 = vmul.f32 %v444, %v547
    %v549 = vmul.f32 %v446, %v547
    %v550 = vadd.f32 %v192, %v548
    %v551 = vadd.f32 %v193, %v549
    %s552 = sld [smem:[#allocation3 + $0x13]]
    %v553 = vstv %s552
    %v554 = vmul.f32 %v448, %v553
    %v555 = vmul.f32 %v450, %v553
    %558 = vrot.lane.b32.xlu0 %v554, 112
    %v559 = vpop.permute.xlu0 %558
    %560 = vrot.lane.b32.xlu0 %v555, 112
    %v561 = vpop.permute.xlu0 %560
    %v562 = vrot.slane %v559, 1
    %v563 = vrot.slane %v561, 1
    %v564 = vsel %vm187, %v559, %v562
    %v565 = vsel %vm187, %v561, %v563
    %v568 = vadd.f32 %v550, %v564
    %v569 = vadd.f32 %v551, %v565
    %s570 = sld [smem:[#allocation3 + $0x1a]]
    %v571 = vstv %s570
    %v572 = vmul.f32 %v444, %v571
    %v573 = vmul.f32 %v446, %v571
    %v574 = vadd.f32 %v282, %v572
    %v575 = vadd.f32 %v283, %v573
    %s576 = sld [smem:[#allocation3 + $0x18]]
    %v577 = vstv %s576
    %v578 = vmul.f32 %v487, %v577
    %v579 = vmul.f32 %v488, %v577
    %v582 = vcombine.low %v578, %v579
    %v584 = vunpack.c.l.s4 1966171168
    %v585 = vunpack.c.0.s8 %v584
    %v586 = vlaneseq
    %v587 = vshrl.u32 %v586, 7
    %v588 = vsub.s32 %v585, %v587
    %v589 = vrot.slane %v582, %v588
    %v590 = vcombine.high %v589, %v589
    %v592 = vunpack.c.l.s4 1966171168
    %v593 = vunpack.c.0.s8 %v592
    %v594 = vlaneseq
    %v595 = vshrl.u32 %v594, 7
    %v596 = vsub.s32 %v593, %v595
    %v597 = vrot.slane %v589, %v596
    %v599 = vunpack.c.l.s4 1966171168
    %v600 = vunpack.c.0.s8 %v599
    %v601 = vlaneseq
    %v602 = vshrl.u32 %v601, 7
    %v603 = vsub.s32 %v600, %v602
    %v604 = vrot.slane %v590, %v603
    %v607 = vadd.f32 %v574, %v597
    %v608 = vadd.f32 %v575, %v604
    %s609 = sld [smem:[#allocation3 + $0x14]]
    %v610 = vstv %s609
    %v611 = vmul.f32 %v448, %v610
    %v612 = vmul.f32 %v450, %v610
    %615 = vrot.lane.b32.xlu0 %v611, 112
    %v616 = vpop.permute.xlu0 %615
    %617 = vrot.lane.b32.xlu0 %v612, 112
    %v618 = vpop.permute.xlu0 %617
    %v619 = vrot.slane %v616, 1
    %v620 = vrot.slane %v618, 1
    %v621 = vsel %vm187, %v616, %v619
    %v622 = vsel %vm187, %v618, %v620
    %v625 = vadd.f32 %v607, %v621
    %v626 = vadd.f32 %v608, %v622
    %s627 = sld [smem:[#allocation3 + $0x12]]
    %v628 = vstv %s627
    %v629 = vmul.f32 %v499, %v628
    %v630 = vmul.f32 %v500, %v628
    %v633 = vcombine.low %v629, %v630
    %v635 = vunpack.c.l.s4 1966171168
    %v636 = vunpack.c.0.s8 %v635
    %v637 = vlaneseq
    %v638 = vshrl.u32 %v637, 7
    %v639 = vsub.s32 %v636, %v638
    %v640 = vrot.slane %v633, %v639
    %v641 = vcombine.high %v640, %v640
    %v643 = vunpack.c.l.s4 1966171168
    %v644 = vunpack.c.0.s8 %v643
    %v645 = vlaneseq
    %v646 = vshrl.u32 %v645, 7
    %v647 = vsub.s32 %v644, %v646
    %v648 = vrot.slane %v640, %v647
    %v650 = vunpack.c.l.s4 1966171168
    %v651 = vunpack.c.0.s8 %v650
    %v652 = vlaneseq
    %v653 = vshrl.u32 %v652, 7
    %v654 = vsub.s32 %v651, %v653
    %v655 = vrot.slane %v641, %v654
    %v658 = vadd.f32 %v625, %v648
    %v659 = vadd.f32 %v626, %v655
    %s660 = sld [smem:[#allocation3 + $0x1f]]
    %v661 = vstv %s660
    %v662 = vmul.f32 %v444, %v661
    %v663 = vmul.f32 %v446, %v661
    %v664 = vadd.f32 %v288, %v662
    %v665 = vadd.f32 %v289, %v663
    %s666 = sld [smem:[#allocation3 + $0x20]]
    %v667 = vstv %s666
    %v668 = vmul.f32 %v444, %v667
    %v669 = vmul.f32 %v446, %v667
    %v670 = vadd.f32 %v327, %v668
    %v671 = vadd.f32 %v328, %v669
    %s672 = sld [smem:[#allocation3 + $0x1e]]
    %v673 = vstv %s672
    %v674 = vmul.f32 %v487, %v673
    %v675 = vmul.f32 %v488, %v673
    %v678 = vcombine.low %v674, %v675
    %v680 = vunpack.c.l.s4 1966171168
    %v681 = vunpack.c.0.s8 %v680
    %v682 = vlaneseq
    %v683 = vshrl.u32 %v682, 7
    %v684 = vsub.s32 %v681, %v683
    %v685 = vrot.slane %v678, %v684
    %v686 = vcombine.high %v685, %v685
    %v688 = vunpack.c.l.s4 1966171168
    %v689 = vunpack.c.0.s8 %v688
    %v690 = vlaneseq
    %v691 = vshrl.u32 %v690, 7
    %v692 = vsub.s32 %v689, %v691
    %v693 = vrot.slane %v685, %v692
    %v695 = vunpack.c.l.s4 1966171168
    %v696 = vunpack.c.0.s8 %v695
    %v697 = vlaneseq
    %v698 = vshrl.u32 %v697, 7
    %v699 = vsub.s32 %v696, %v698
    %v700 = vrot.slane %v686, %v699
    %v703 = vadd.f32 %v670, %v693
    %v704 = vadd.f32 %v671, %v700
    %s705 = sld [smem:[#allocation3 + $0x22]]
    %v706 = vstv %s705
    %v707 = vmul.f32 %v444, %v706
    %v708 = vmul.f32 %v446, %v706
    %v709 = vadd.f32 %v351, %v707
    %v710 = vadd.f32 %v352, %v708
    %s711 = sld [smem:[#allocation3 + $0x1c]]
    %v712 = vstv %s711
    %v713 = vmul.f32 %v448, %v712
    %v714 = vmul.f32 %v450, %v712
    %717 = vrot.lane.b32.xlu0 %v713, 112
    %v718 = vpop.permute.xlu0 %717
    %719 = vrot.lane.b32.xlu0 %v714, 112
    %v720 = vpop.permute.xlu0 %719
    %v721 = vrot.slane %v718, 1
    %v722 = vrot.slane %v720, 1
    %v723 = vsel %vm187, %v718, %v721
    %v724 = vsel %vm187, %v720, %v722
    %v727 = vadd.f32 %v709, %v723
    %v728 = vadd.f32 %v710, %v724
    %s729 = sld [smem:[#allocation3 + $0x23]]
    %v730 = vstv %s729
    %v731 = vmul.f32 %v444, %v730
    %v732 = vmul.f32 %v446, %v730
    %v733 = vadd.f32 %v441, %v731
    %v734 = vadd.f32 %v442, %v732
    %s735 = sld [smem:[#allocation3 + $0x21]]
    %v736 = vstv %s735
    %v737 = vmul.f32 %v487, %v736
    %v738 = vmul.f32 %v488, %v736
    %v741 = vcombine.low %v737, %v738
    %v743 = vunpack.c.l.s4 1966171168
    %v744 = vunpack.c.0.s8 %v743
    %v745 = vlaneseq
    %v746 = vshrl.u32 %v745, 7
    %v747 = vsub.s32 %v744, %v746
    %v748 = vrot.slane %v741, %v747
    %v749 = vcombine.high %v748, %v748
    %v751 = vunpack.c.l.s4 1966171168
    %v752 = vunpack.c.0.s8 %v751
    %v753 = vlaneseq
    %v754 = vshrl.u32 %v753, 7
    %v755 = vsub.s32 %v752, %v754
    %v756 = vrot.slane %v748, %v755
    %v758 = vunpack.c.l.s4 1966171168
    %v759 = vunpack.c.0.s8 %v758
    %v760 = vlaneseq
    %v761 = vshrl.u32 %v760, 7
    %v762 = vsub.s32 %v759, %v761
    %v763 = vrot.slane %v749, %v762
    %v766 = vadd.f32 %v733, %v756
    %v767 = vadd.f32 %v734, %v763
    %s768 = sld [smem:[#allocation3 + $0x1d]]
    %v769 = vstv %s768
    %v770 = vmul.f32 %v448, %v769
    %v771 = vmul.f32 %v450, %v769
    %774 = vrot.lane.b32.xlu0 %v770, 112
    %v775 = vpop.permute.xlu0 %774
    %776 = vrot.lane.b32.xlu0 %v771, 112
    %v777 = vpop.permute.xlu0 %776
    %v778 = vrot.slane %v775, 1
    %v779 = vrot.slane %v777, 1
    %v780 = vsel %vm187, %v775, %v778
    %v781 = vsel %vm187, %v777, %v779
    %v784 = vadd.f32 %v766, %v780
    %v785 = vadd.f32 %v767, %v781
    %s786 = sld [smem:[#allocation3 + $0x1b]]
    %v787 = vstv %s786
    %v788 = vmul.f32 %v499, %v787
    %v789 = vmul.f32 %v500, %v787
    %v792 = vcombine.low %v788, %v789
    %v794 = vunpack.c.l.s4 1966171168
    %v795 = vunpack.c.0.s8 %v794
    %v796 = vlaneseq
    %v797 = vshrl.u32 %v796, 7
    %v798 = vsub.s32 %v795, %v797
    %v799 = vrot.slane %v792, %v798
    %v800 = vcombine.high %v799, %v799
    %v802 = vunpack.c.l.s4 1966171168
    %v803 = vunpack.c.0.s8 %v802
    %v804 = vlaneseq
    %v805 = vshrl.u32 %v804, 7
    %v806 = vsub.s32 %v803, %v805
    %v807 = vrot.slane %v799, %v806
    %v809 = vunpack.c.l.s4 1966171168
    %v810 = vunpack.c.0.s8 %v809
    %v811 = vlaneseq
    %v812 = vshrl.u32 %v811, 7
    %v813 = vsub.s32 %v810, %v812
    %v814 = vrot.slane %v800, %v813
    %v817 = vadd.f32 %v784, %v807
    %v818 = vadd.f32 %v785, %v814
    %s819 = scalar_lea.vmem [#allocation2], 2
    %v820 = vld [vmem:[%s819] ss:$4 sm:$0x3]
    %s821 = scalar_lea.vmem [#allocation2], 14
    %v822 = vld [vmem:[%s821] ss:$4 sm:$0x3]
    %s823 = scalar_lea.vmem [#allocation2], 2
    %v824 = vld [vmem:[%s823] ss:$4 sm:$0x7]
    %s825 = scalar_lea.vmem [#allocation2], 14
    %v826 = vld [vmem:[%s825] ss:$4 sm:$0x7]
    %v829 = vcombine.low %v824, %v826
    %v831 = vunpack.c.l.s4 1966171168
    %v832 = vunpack.c.0.s8 %v831
    %v833 = vlaneseq
    %v834 = vshrl.u32 %v833, 7
    %v835 = vsub.s32 %v832, %v834
    %v836 = vrot.slane %v829, %v835
    %v837 = vcombine.high %v836, %v836
    %v839 = vunpack.c.l.s4 1966171168
    %v840 = vunpack.c.0.s8 %v839
    %v841 = vlaneseq
    %v842 = vshrl.u32 %v841, 7
    %v843 = vsub.s32 %v840, %v842
    %v844 = vrot.slane %v836, %v843
    %v846 = vunpack.c.l.s4 1966171168
    %v847 = vunpack.c.0.s8 %v846
    %v848 = vlaneseq
    %v849 = vshrl.u32 %v848, 7
    %v850 = vsub.s32 %v847, %v849
    %v851 = vrot.slane %v837, %v850
    %v852 = vcombine.high %v844, %v844
    %853 = vrot.lane.b32.xlu0 %v844, 127
    %v854 = vpop.permute.xlu0 %853
    %855 = vrot.lane.b32.xlu0 %v851, 127
    %v856 = vpop.permute.xlu0 %855
    %857 = vrot.lane.b32.xlu0 %v852, 127
    %v858 = vpop.permute.xlu0 %857
    %v859 = vsel %vm104, %v854, %v856
    %v860 = vsel %vm104, %v856, %v858
    %v863 = vsel %vm64, %v859, 0.0
    %v864 = vsel %vm65, %v860, 0.0
    %865 = vrot.lane.b32.xlu0 %v844, 111
    %v866 = vpop.permute.xlu0 %865
    %867 = vrot.lane.b32.xlu0 %v851, 111
    %v868 = vpop.permute.xlu0 %867
    %869 = vrot.lane.b32.xlu0 %v852, 111
    %v870 = vpop.permute.xlu0 %869
    %v871 = vsel %vm117, %v866, %v868
    %v872 = vsel %vm117, %v868, %v870
    %v875 = vsel %vm64, %v871, 0.0
    %v876 = vsel %vm65, %v872, 0.0
    %s877 = sld [smem:[#allocation3 + $0x28]]
    %v878 = vstv %s877
    %v879 = vmul.f32 %v820, %v878
    %v880 = vmul.f32 %v822, %v878
    %v881 = vadd.f32 %v505, %v879
    %v882 = vadd.f32 %v506, %v880
    %s883 = sld [smem:[#allocation3 + $0x29]]
    %v884 = vstv %s883
    %v885 = vmul.f32 %v820, %v884
    %v886 = vmul.f32 %v822, %v884
    %v887 = vadd.f32 %v544, %v885
    %v888 = vadd.f32 %v545, %v886
    %s889 = sld [smem:[#allocation3 + $0x27]]
    %v890 = vstv %s889
    %v891 = vmul.f32 %v863, %v890
    %v892 = vmul.f32 %v864, %v890
    %v895 = vcombine.low %v891, %v892
    %v897 = vunpack.c.l.s4 1966171168
    %v898 = vunpack.c.0.s8 %v897
    %v899 = vlaneseq
    %v900 = vshrl.u32 %v899, 7
    %v901 = vsub.s32 %v898, %v900
    %v902 = vrot.slane %v895, %v901
    %v903 = vcombine.high %v902, %v902
    %v905 = vunpack.c.l.s4 1966171168
    %v906 = vunpack.c.0.s8 %v905
    %v907 = vlaneseq
    %v908 = vshrl.u32 %v907, 7
    %v909 = vsub.s32 %v906, %v908
    %v910 = vrot.slane %v902, %v909
    %v912 = vunpack.c.l.s4 1966171168
    %v913 = vunpack.c.0.s8 %v912
    %v914 = vlaneseq
    %v915 = vshrl.u32 %v914, 7
    %v916 = vsub.s32 %v913, %v915
    %v917 = vrot.slane %v903, %v916
    %v920 = vadd.f32 %v887, %v910
    %v921 = vadd.f32 %v888, %v917
    %s922 = sld [smem:[#allocation3 + $0x2b]]
    %v923 = vstv %s922
    %v924 = vmul.f32 %v820, %v923
    %v925 = vmul.f32 %v822, %v923
    %v926 = vadd.f32 %v568, %v924
    %v927 = vadd.f32 %v569, %v925
    %s928 = sld [smem:[#allocation3 + $0x25]]
    %v929 = vstv %s928
    %v930 = vmul.f32 %v824, %v929
    %v931 = vmul.f32 %v826, %v929
    %934 = vrot.lane.b32.xlu0 %v930, 112
    %v935 = vpop.permute.xlu0 %934
    %936 = vrot.lane.b32.xlu0 %v931, 112
    %v937 = vpop.permute.xlu0 %936
    %v938 = vrot.slane %v935, 1
    %v939 = vrot.slane %v937, 1
    %v940 = vsel %vm187, %v935, %v938
    %v941 = vsel %vm187, %v937, %v939
    %v944 = vadd.f32 %v926, %v940
    %v945 = vadd.f32 %v927, %v941
    %s946 = sld [smem:[#allocation3 + $0x2c]]
    %v947 = vstv %s946
    %v948 = vmul.f32 %v820, %v947
    %v949 = vmul.f32 %v822, %v947
    %v950 = vadd.f32 %v658, %v948
    %v951 = vadd.f32 %v659, %v949
    %s952 = sld [smem:[#allocation3 + $0x2a]]
    %v953 = vstv %s952
    %v954 = vmul.f32 %v863, %v953
    %v955 = vmul.f32 %v864, %v953
    %v958 = vcombine.low %v954, %v955
    %v960 = vunpack.c.l.s4 1966171168
    %v961 = vunpack.c.0.s8 %v960
    %v962 = vlaneseq
    %v963 = vshrl.u32 %v962, 7
    %v964 = vsub.s32 %v961, %v963
    %v965 = vrot.slane %v958, %v964
    %v966 = vcombine.high %v965, %v965
    %v968 = vunpack.c.l.s4 1966171168
    %v969 = vunpack.c.0.s8 %v968
    %v970 = vlaneseq
    %v971 = vshrl.u32 %v970, 7
    %v972 = vsub.s32 %v969, %v971
    %v973 = vrot.slane %v965, %v972
    %v975 = vunpack.c.l.s4 1966171168
    %v976 = vunpack.c.0.s8 %v975
    %v977 = vlaneseq
    %v978 = vshrl.u32 %v977, 7
    %v979 = vsub.s32 %v976, %v978
    %v980 = vrot.slane %v966, %v979
    %v983 = vadd.f32 %v950, %v973
    %v984 = vadd.f32 %v951, %v980
    %s985 = sld [smem:[#allocation3 + $0x26]]
    %v986 = vstv %s985
    %v987 = vmul.f32 %v824, %v986
    %v988 = vmul.f32 %v826, %v986
    %991 = vrot.lane.b32.xlu0 %v987, 112
    %v992 = vpop.permute.xlu0 %991
    %993 = vrot.lane.b32.xlu0 %v988, 112
    %v994 = vpop.permute.xlu0 %993
    %v995 = vrot.slane %v992, 1
    %v996 = vrot.slane %v994, 1
    %v997 = vsel %vm187, %v992, %v995
    %v998 = vsel %vm187, %v994, %v996
    %v1001 = vadd.f32 %v983, %v997
    %v1002 = vadd.f32 %v984, %v998
    %s1003 = sld [smem:[#allocation3 + $0x24]]
    %v1004 = vstv %s1003
    %v1005 = vmul.f32 %v875, %v1004
    %v1006 = vmul.f32 %v876, %v1004
    %v1009 = vcombine.low %v1005, %v1006
    %v1011 = vunpack.c.l.s4 1966171168
    %v1012 = vunpack.c.0.s8 %v1011
    %v1013 = vlaneseq
    %v1014 = vshrl.u32 %v1013, 7
    %v1015 = vsub.s32 %v1012, %v1014
    %v1016 = vrot.slane %v1009, %v1015
    %v1017 = vcombine.high %v1016, %v1016
    %v1019 = vunpack.c.l.s4 1966171168
    %v1020 = vunpack.c.0.s8 %v1019
    %v1021 = vlaneseq
    %v1022 = vshrl.u32 %v1021, 7
    %v1023 = vsub.s32 %v1020, %v1022
    %v1024 = vrot.slane %v1016, %v1023
    %v1026 = vunpack.c.l.s4 1966171168
    %v1027 = vunpack.c.0.s8 %v1026
    %v1028 = vlaneseq
    %v1029 = vshrl.u32 %v1028, 7
    %v1030 = vsub.s32 %v1027, %v1029
    %v1031 = vrot.slane %v1017, %v1030
    %v1034 = vadd.f32 %v1001, %v1024
    %v1035 = vadd.f32 %v1002, %v1031
    %s1036 = sld [smem:[#allocation3 + $0x31]]
    %v1037 = vstv %s1036
    %v1038 = vmul.f32 %v820, %v1037
    %v1039 = vmul.f32 %v822, %v1037
    %v1040 = vadd.f32 %v664, %v1038
    %v1041 = vadd.f32 %v665, %v1039
    %s1042 = sld [smem:[#allocation3 + $0x32]]
    %v1043 = vstv %s1042
    %v1044 = vmul.f32 %v820, %v1043
    %v1045 = vmul.f32 %v822, %v1043
    %v1046 = vadd.f32 %v703, %v1044
    %v1047 = vadd.f32 %v704, %v1045
    %s1048 = sld [smem:[#allocation3 + $0x30]]
    %v1049 = vstv %s1048
    %v1050 = vmul.f32 %v863, %v1049
    %v1051 = vmul.f32 %v864, %v1049
    %v1054 = vcombine.low %v1050, %v1051
    %v1056 = vunpack.c.l.s4 1966171168
    %v1057 = vunpack.c.0.s8 %v1056
    %v1058 = vlaneseq
    %v1059 = vshrl.u32 %v1058, 7
    %v1060 = vsub.s32 %v1057, %v1059
    %v1061 = vrot.slane %v1054, %v1060
    %v1062 = vcombine.high %v1061, %v1061
    %v1064 = vunpack.c.l.s4 1966171168
    %v1065 = vunpack.c.0.s8 %v1064
    %v1066 = vlaneseq
    %v1067 = vshrl.u32 %v1066, 7
    %v1068 = vsub.s32 %v1065, %v1067
    %v1069 = vrot.slane %v1061, %v1068
    %v1071 = vunpack.c.l.s4 1966171168
    %v1072 = vunpack.c.0.s8 %v1071
    %v1073 = vlaneseq
    %v1074 = vshrl.u32 %v1073, 7
    %v1075 = vsub.s32 %v1072, %v1074
    %v1076 = vrot.slane %v1062, %v1075
    %v1079 = vadd.f32 %v1046, %v1069
    %v1080 = vadd.f32 %v1047, %v1076
    %s1081 = sld [smem:[#allocation3 + $0x34]]
    %v1082 = vstv %s1081
    %v1083 = vmul.f32 %v820, %v1082
    %v1084 = vmul.f32 %v822, %v1082
    %v1085 = vadd.f32 %v727, %v1083
    %v1086 = vadd.f32 %v728, %v1084
    %s1087 = sld [smem:[#allocation3 + $0x2e]]
    %v1088 = vstv %s1087
    %v1089 = vmul.f32 %v824, %v1088
    %v1090 = vmul.f32 %v826, %v1088
    %1093 = vrot.lane.b32.xlu0 %v1089, 112
    %v1094 = vpop.permute.xlu0 %1093
    %1095 = vrot.lane.b32.xlu0 %v1090, 112
    %v1096 = vpop.permute.xlu0 %1095
    %v1097 = vrot.slane %v1094, 1
    %v1098 = vrot.slane %v1096, 1
    %v1099 = vsel %vm187, %v1094, %v1097
    %v1100 = vsel %vm187, %v1096, %v1098
    %v1103 = vadd.f32 %v1085, %v1099
    %v1104 = vadd.f32 %v1086, %v1100
    %s1105 = sld [smem:[#allocation3 + $0x35]]
    %v1106 = vstv %s1105
    %v1107 = vmul.f32 %v820, %v1106
    %v1108 = vmul.f32 %v822, %v1106
    %v1109 = vadd.f32 %v817, %v1107
    %v1110 = vadd.f32 %v818, %v1108
    %s1111 = sld [smem:[#allocation3 + $0x33]]
    %v1112 = vstv %s1111
    %v1113 = vmul.f32 %v863, %v1112
    %v1114 = vmul.f32 %v864, %v1112
    %v1117 = vcombine.low %v1113, %v1114
    %v1119 = vunpack.c.l.s4 1966171168
    %v1120 = vunpack.c.0.s8 %v1119
    %v1121 = vlaneseq
    %v1122 = vshrl.u32 %v1121, 7
    %v1123 = vsub.s32 %v1120, %v1122
    %v1124 = vrot.slane %v1117, %v1123
    %v1125 = vcombine.high %v1124, %v1124
    %v1127 = vunpack.c.l.s4 1966171168
    %v1128 = vunpack.c.0.s8 %v1127
    %v1129 = vlaneseq
    %v1130 = vshrl.u32 %v1129, 7
    %v1131 = vsub.s32 %v1128, %v1130
    %v1132 = vrot.slane %v1124, %v1131
    %v1134 = vunpack.c.l.s4 1966171168
    %v1135 = vunpack.c.0.s8 %v1134
    %v1136 = vlaneseq
    %v1137 = vshrl.u32 %v1136, 7
    %v1138 = vsub.s32 %v1135, %v1137
    %v1139 = vrot.slane %v1125, %v1138
    %v1142 = vadd.f32 %v1109, %v1132
    %v1143 = vadd.f32 %v1110, %v1139
    %s1144 = sld [smem:[#allocation3 + $0x2f]]
    %v1145 = vstv %s1144
    %v1146 = vmul.f32 %v824, %v1145
    %v1147 = vmul.f32 %v826, %v1145
    %1150 = vrot.lane.b32.xlu0 %v1146, 112
    %v1151 = vpop.permute.xlu0 %1150
    %1152 = vrot.lane.b32.xlu0 %v1147, 112
    %v1153 = vpop.permute.xlu0 %1152
    %v1154 = vrot.slane %v1151, 1
    %v1155 = vrot.slane %v1153, 1
    %v1156 = vsel %vm187, %v1151, %v1154
    %v1157 = vsel %vm187, %v1153, %v1155
    %v1160 = vadd.f32 %v1142, %v1156
    %v1161 = vadd.f32 %v1143, %v1157
    %s1162 = sld [smem:[#allocation3 + $0x2d]]
    %v1163 = vstv %s1162
    %v1164 = vmul.f32 %v875, %v1163
    %v1165 = vmul.f32 %v876, %v1163
    %v1168 = vcombine.low %v1164, %v1165
    %v1170 = vunpack.c.l.s4 1966171168
    %v1171 = vunpack.c.0.s8 %v1170
    %v1172 = vlaneseq
    %v1173 = vshrl.u32 %v1172, 7
    %v1174 = vsub.s32 %v1171, %v1173
    %v1175 = vrot.slane %v1168, %v1174
    %v1176 = vcombine.high %v1175, %v1175
    %v1178 = vunpack.c.l.s4 1966171168
    %v1179 = vunpack.c.0.s8 %v1178
    %v1180 = vlaneseq
    %v1181 = vshrl.u32 %v1180, 7
    %v1182 = vsub.s32 %v1179, %v1181
    %v1183 = vrot.slane %v1175, %v1182
    %v1185 = vunpack.c.l.s4 1966171168
    %v1186 = vunpack.c.0.s8 %v1185
    %v1187 = vlaneseq
    %v1188 = vshrl.u32 %v1187, 7
    %v1189 = vsub.s32 %v1186, %v1188
    %v1190 = vrot.slane %v1176, %v1189
    %v1193 = vadd.f32 %v1160, %v1183
    %v1194 = vadd.f32 %v1161, %v1190
    %s1195 = scalar_lea.vmem [#allocation2], 3
    %v1196 = vld [vmem:[%s1195] ss:$4 sm:$0x3]
    %s1197 = scalar_lea.vmem [#allocation2], 15
    %v1198 = vld [vmem:[%s1197] ss:$4 sm:$0x3]
    %s1199 = scalar_lea.vmem [#allocation2], 3
    %v1200 = vld [vmem:[%s1199] ss:$4 sm:$0x7]
    %s1201 = scalar_lea.vmem [#allocation2], 15
    %v1202 = vld [vmem:[%s1201] ss:$4 sm:$0x7]
    %v1205 = vcombine.low %v1200, %v1202
    %v1207 = vunpack.c.l.s4 1966171168
    %v1208 = vunpack.c.0.s8 %v1207
    %v1209 = vlaneseq
    %v1210 = vshrl.u32 %v1209, 7
    %v1211 = vsub.s32 %v1208, %v1210
    %v1212 = vrot.slane %v1205, %v1211
    %v1213 = vcombine.high %v1212, %v1212
    %v1215 = vunpack.c.l.s4 1966171168
    %v1216 = vunpack.c.0.s8 %v1215
    %v1217 = vlaneseq
    %v1218 = vshrl.u32 %v1217, 7
    %v1219 = vsub.s32 %v1216, %v1218
    %v1220 = vrot.slane %v1212, %v1219
    %v1222 = vunpack.c.l.s4 1966171168
    %v1223 = vunpack.c.0.s8 %v1222
    %v1224 = vlaneseq
    %v1225 = vshrl.u32 %v1224, 7
    %v1226 = vsub.s32 %v1223, %v1225
    %v1227 = vrot.slane %v1213, %v1226
    %v1228 = vcombine.high %v1220, %v1220
    %1229 = vrot.lane.b32.xlu0 %v1220, 127
    %v1230 = vpop.permute.xlu0 %1229
    %1231 = vrot.lane.b32.xlu0 %v1227, 127
    %v1232 = vpop.permute.xlu0 %1231
    %1233 = vrot.lane.b32.xlu0 %v1228, 127
    %v1234 = vpop.permute.xlu0 %1233
    %v1235 = vsel %vm104, %v1230, %v1232
    %v1236 = vsel %vm104, %v1232, %v1234
    %v1239 = vsel %vm64, %v1235, 0.0
    %v1240 = vsel %vm65, %v1236, 0.0
    %1241 = vrot.lane.b32.xlu0 %v1220, 111
    %v1242 = vpop.permute.xlu0 %1241
    %1243 = vrot.lane.b32.xlu0 %v1227, 111
    %v1244 = vpop.permute.xlu0 %1243
    %1245 = vrot.lane.b32.xlu0 %v1228, 111
    %v1246 = vpop.permute.xlu0 %1245
    %v1247 = vsel %vm117, %v1242, %v1244
    %v1248 = vsel %vm117, %v1244, %v1246
    %v1251 = vsel %vm64, %v1247, 0.0
    %v1252 = vsel %vm65, %v1248, 0.0
    %s1253 = sld [smem:[#allocation3 + $0x3a]]
    %v1254 = vstv %s1253
    %v1255 = vmul.f32 %v1196, %v1254
    %v1256 = vmul.f32 %v1198, %v1254
    %v1257 = vadd.f32 %v881, %v1255
    %v1258 = vadd.f32 %v882, %v1256
    %s1259 = sld [smem:[#allocation3 + $0x3b]]
    %v1260 = vstv %s1259
    %v1261 = vmul.f32 %v1196, %v1260
    %v1262 = vmul.f32 %v1198, %v1260
    %v1263 = vadd.f32 %v920, %v1261
    %v1264 = vadd.f32 %v921, %v1262
    %s1265 = sld [smem:[#allocation3 + $0x39]]
    %v1266 = vstv %s1265
    %v1267 = vmul.f32 %v1239, %v1266
    %v1268 = vmul.f32 %v1240, %v1266
    %v1271 = vcombine.low %v1267, %v1268
    %v1273 = vunpack.c.l.s4 1966171168
    %v1274 = vunpack.c.0.s8 %v1273
    %v1275 = vlaneseq
    %v1276 = vshrl.u32 %v1275, 7
    %v1277 = vsub.s32 %v1274, %v1276
    %v1278 = vrot.slane %v1271, %v1277
    %v1279 = vcombine.high %v1278, %v1278
    %v1281 = vunpack.c.l.s4 1966171168
    %v1282 = vunpack.c.0.s8 %v1281
    %v1283 = vlaneseq
    %v1284 = vshrl.u32 %v1283, 7
    %v1285 = vsub.s32 %v1282, %v1284
    %v1286 = vrot.slane %v1278, %v1285
    %v1288 = vunpack.c.l.s4 1966171168
    %v1289 = vunpack.c.0.s8 %v1288
    %v1290 = vlaneseq
    %v1291 = vshrl.u32 %v1290, 7
    %v1292 = vsub.s32 %v1289, %v1291
    %v1293 = vrot.slane %v1279, %v1292
    %v1296 = vadd.f32 %v1263, %v1286
    %v1297 = vadd.f32 %v1264, %v1293
    %s1298 = sld [smem:[#allocation3 + $0x3d]]
    %v1299 = vstv %s1298
    %v1300 = vmul.f32 %v1196, %v1299
    %v1301 = vmul.f32 %v1198, %v1299
    %v1302 = vadd.f32 %v944, %v1300
    %v1303 = vadd.f32 %v945, %v1301
    %s1304 = sld [smem:[#allocation3 + $0x37]]
    %v1305 = vstv %s1304
    %v1306 = vmul.f32 %v1200, %v1305
    %v1307 = vmul.f32 %v1202, %v1305
    %1310 = vrot.lane.b32.xlu0 %v1306, 112
    %v1311 = vpop.permute.xlu0 %1310
    %1312 = vrot.lane.b32.xlu0 %v1307, 112
    %v1313 = vpop.permute.xlu0 %1312
    %v1314 = vrot.slane %v1311, 1
    %v1315 = vrot.slane %v1313, 1
    %v1316 = vsel %vm187, %v1311, %v1314
    %v1317 = vsel %vm187, %v1313, %v1315
    %v1320 = vadd.f32 %v1302, %v1316
    %v1321 = vadd.f32 %v1303, %v1317
    %s1322 = sld [smem:[#allocation3 + $0x3e]]
    %v1323 = vstv %s1322
    %v1324 = vmul.f32 %v1196, %v1323
    %v1325 = vmul.f32 %v1198, %v1323
    %v1326 = vadd.f32 %v1034, %v1324
    %v1327 = vadd.f32 %v1035, %v1325
    %s1328 = sld [smem:[#allocation3 + $0x3c]]
    %v1329 = vstv %s1328
    %v1330 = vmul.f32 %v1239, %v1329
    %v1331 = vmul.f32 %v1240, %v1329
    %v1334 = vcombine.low %v1330, %v1331
    %v1336 = vunpack.c.l.s4 1966171168
    %v1337 = vunpack.c.0.s8 %v1336
    %v1338 = vlaneseq
    %v1339 = vshrl.u32 %v1338, 7
    %v1340 = vsub.s32 %v1337, %v1339
    %v1341 = vrot.slane %v1334, %v1340
    %v1342 = vcombine.high %v1341, %v1341
    %v1344 = vunpack.c.l.s4 1966171168
    %v1345 = vunpack.c.0.s8 %v1344
    %v1346 = vlaneseq
    %v1347 = vshrl.u32 %v1346, 7
    %v1348 = vsub.s32 %v1345, %v1347
    %v1349 = vrot.slane %v1341, %v1348
    %v1351 = vunpack.c.l.s4 1966171168
    %v1352 = vunpack.c.0.s8 %v1351
    %v1353 = vlaneseq
    %v1354 = vshrl.u32 %v1353, 7
    %v1355 = vsub.s32 %v1352, %v1354
    %v1356 = vrot.slane %v1342, %v1355
    %v1359 = vadd.f32 %v1326, %v1349
    %v1360 = vadd.f32 %v1327, %v1356
    %s1361 = sld [smem:[#allocation3 + $0x38]]
    %v1362 = vstv %s1361
    %v1363 = vmul.f32 %v1200, %v1362
    %v1364 = vmul.f32 %v1202, %v1362
    %1367 = vrot.lane.b32.xlu0 %v1363, 112
    %v1368 = vpop.permute.xlu0 %1367
    %1369 = vrot.lane.b32.xlu0 %v1364, 112
    %v1370 = vpop.permute.xlu0 %1369
    %v1371 = vrot.slane %v1368, 1
    %v1372 = vrot.slane %v1370, 1
    %v1373 = vsel %vm187, %v1368, %v1371
    %v1374 = vsel %vm187, %v1370, %v1372
    %v1377 = vadd.f32 %v1359, %v1373
    %v1378 = vadd.f32 %v1360, %v1374
    %s1379 = sld [smem:[#allocation3 + $0x36]]
    %v1380 = vstv %s1379
    %v1381 = vmul.f32 %v1251, %v1380
    %v1382 = vmul.f32 %v1252, %v1380
    %v1385 = vcombine.low %v1381, %v1382
    %v1387 = vunpack.c.l.s4 1966171168
    %v1388 = vunpack.c.0.s8 %v1387
    %v1389 = vlaneseq
    %v1390 = vshrl.u32 %v1389, 7
    %v1391 = vsub.s32 %v1388, %v1390
    %v1392 = vrot.slane %v1385, %v1391
    %v1393 = vcombine.high %v1392, %v1392
    %v1395 = vunpack.c.l.s4 1966171168
    %v1396 = vunpack.c.0.s8 %v1395
    %v1397 = vlaneseq
    %v1398 = vshrl.u32 %v1397, 7
    %v1399 = vsub.s32 %v1396, %v1398
    %v1400 = vrot.slane %v1392, %v1399
    %v1402 = vunpack.c.l.s4 1966171168
    %v1403 = vunpack.c.0.s8 %v1402
    %v1404 = vlaneseq
    %v1405 = vshrl.u32 %v1404, 7
    %v1406 = vsub.s32 %v1403, %v1405
    %v1407 = vrot.slane %v1393, %v1406
    %v1410 = vadd.f32 %v1377, %v1400
    %v1411 = vadd.f32 %v1378, %v1407
    %s1412 = sld [smem:[#allocation3 + $0x43]]
    %v1413 = vstv %s1412
    %v1414 = vmul.f32 %v1196, %v1413
    %v1415 = vmul.f32 %v1198, %v1413
    %v1416 = vadd.f32 %v1040, %v1414
    %v1417 = vadd.f32 %v1041, %v1415
    %s1418 = sld [smem:[#allocation3 + $0x44]]
    %v1419 = vstv %s1418
    %v1420 = vmul.f32 %v1196, %v1419
    %v1421 = vmul.f32 %v1198, %v1419
    %v1422 = vadd.f32 %v1079, %v1420
    %v1423 = vadd.f32 %v1080, %v1421
    %s1424 = sld [smem:[#allocation3 + $0x42]]
    %v1425 = vstv %s1424
    %v1426 = vmul.f32 %v1239, %v1425
    %v1427 = vmul.f32 %v1240, %v1425
    %v1430 = vcombine.low %v1426, %v1427
    %v1432 = vunpack.c.l.s4 1966171168
    %v1433 = vunpack.c.0.s8 %v1432
    %v1434 = vlaneseq
    %v1435 = vshrl.u32 %v1434, 7
    %v1436 = vsub.s32 %v1433, %v1435
    %v1437 = vrot.slane %v1430, %v1436
    %v1438 = vcombine.high %v1437, %v1437
    %v1440 = vunpack.c.l.s4 1966171168
    %v1441 = vunpack.c.0.s8 %v1440
    %v1442 = vlaneseq
    %v1443 = vshrl.u32 %v1442, 7
    %v1444 = vsub.s32 %v1441, %v1443
    %v1445 = vrot.slane %v1437, %v1444
    %v1447 = vunpack.c.l.s4 1966171168
    %v1448 = vunpack.c.0.s8 %v1447
    %v1449 = vlaneseq
    %v1450 = vshrl.u32 %v1449, 7
    %v1451 = vsub.s32 %v1448, %v1450
    %v1452 = vrot.slane %v1438, %v1451
    %v1455 = vadd.f32 %v1422, %v1445
    %v1456 = vadd.f32 %v1423, %v1452
    %s1457 = sld [smem:[#allocation3 + $0x46]]
    %v1458 = vstv %s1457
    %v1459 = vmul.f32 %v1196, %v1458
    %v1460 = vmul.f32 %v1198, %v1458
    %v1461 = vadd.f32 %v1103, %v1459
    %v1462 = vadd.f32 %v1104, %v1460
    %s1463 = sld [smem:[#allocation3 + $0x40]]
    %v1464 = vstv %s1463
    %v1465 = vmul.f32 %v1200, %v1464
    %v1466 = vmul.f32 %v1202, %v1464
    %1469 = vrot.lane.b32.xlu0 %v1465, 112
    %v1470 = vpop.permute.xlu0 %1469
    %1471 = vrot.lane.b32.xlu0 %v1466, 112
    %v1472 = vpop.permute.xlu0 %1471
    %v1473 = vrot.slane %v1470, 1
    %v1474 = vrot.slane %v1472, 1
    %v1475 = vsel %vm187, %v1470, %v1473
    %v1476 = vsel %vm187, %v1472, %v1474
    %v1479 = vadd.f32 %v1461, %v1475
    %v1480 = vadd.f32 %v1462, %v1476
    %s1481 = sld [smem:[#allocation3 + $0x47]]
    %v1482 = vstv %s1481
    %v1483 = vmul.f32 %v1196, %v1482
    %v1484 = vmul.f32 %v1198, %v1482
    %v1485 = vadd.f32 %v1193, %v1483
    %v1486 = vadd.f32 %v1194, %v1484
    %s1487 = sld [smem:[#allocation3 + $0x45]]
    %v1488 = vstv %s1487
    %v1489 = vmul.f32 %v1239, %v1488
    %v1490 = vmul.f32 %v1240, %v1488
    %v1493 = vcombine.low %v1489, %v1490
    %v1495 = vunpack.c.l.s4 1966171168
    %v1496 = vunpack.c.0.s8 %v1495
    %v1497 = vlaneseq
    %v1498 = vshrl.u32 %v1497, 7
    %v1499 = vsub.s32 %v1496, %v1498
    %v1500 = vrot.slane %v1493, %v1499
    %v1501 = vcombine.high %v1500, %v1500
    %v1503 = vunpack.c.l.s4 1966171168
    %v1504 = vunpack.c.0.s8 %v1503
    %v1505 = vlaneseq
    %v1506 = vshrl.u32 %v1505, 7
    %v1507 = vsub.s32 %v1504, %v1506
    %v1508 = vrot.slane %v1500, %v1507
    %v1510 = vunpack.c.l.s4 1966171168
    %v1511 = vunpack.c.0.s8 %v1510
    %v1512 = vlaneseq
    %v1513 = vshrl.u32 %v1512, 7
    %v1514 = vsub.s32 %v1511, %v1513
    %v1515 = vrot.slane %v1501, %v1514
    %v1518 = vadd.f32 %v1485, %v1508
    %v1519 = vadd.f32 %v1486, %v1515
    %s1520 = sld [smem:[#allocation3 + $0x41]]
    %v1521 = vstv %s1520
    %v1522 = vmul.f32 %v1200, %v1521
    %v1523 = vmul.f32 %v1202, %v1521
    %1526 = vrot.lane.b32.xlu0 %v1522, 112
    %v1527 = vpop.permute.xlu0 %1526
    %1528 = vrot.lane.b32.xlu0 %v1523, 112
    %v1529 = vpop.permute.xlu0 %1528
    %v1530 = vrot.slane %v1527, 1
    %v1531 = vrot.slane %v1529, 1
    %v1532 = vsel %vm187, %v1527, %v1530
    %v1533 = vsel %vm187, %v1529, %v1531
    %v1536 = vadd.f32 %v1518, %v1532
    %v1537 = vadd.f32 %v1519, %v1533
    %s1538 = sld [smem:[#allocation3 + $0x3f]]
    %v1539 = vstv %s1538
    %v1540 = vmul.f32 %v1251, %v1539
    %v1541 = vmul.f32 %v1252, %v1539
    %v1544 = vcombine.low %v1540, %v1541
    %v1546 = vunpack.c.l.s4 1966171168
    %v1547 = vunpack.c.0.s8 %v1546
    %v1548 = vlaneseq
    %v1549 = vshrl.u32 %v1548, 7
    %v1550 = vsub.s32 %v1547, %v1549
    %v1551 = vrot.slane %v1544, %v1550
    %v1552 = vcombine.high %v1551, %v1551
    %v1554 = vunpack.c.l.s4 1966171168
    %v1555 = vunpack.c.0.s8 %v1554
    %v1556 = vlaneseq
    %v1557 = vshrl.u32 %v1556, 7
    %v1558 = vsub.s32 %v1555, %v1557
    %v1559 = vrot.slane %v1551, %v1558
    %v1561 = vunpack.c.l.s4 1966171168
    %v1562 = vunpack.c.0.s8 %v1561
    %v1563 = vlaneseq
    %v1564 = vshrl.u32 %v1563, 7
    %v1565 = vsub.s32 %v1562, %v1564
    %v1566 = vrot.slane %v1552, %v1565
    %v1569 = vadd.f32 %v1536, %v1559
    %v1570 = vadd.f32 %v1537, %v1566
    %v1573 = vcombine.low %v1257, %v1258
    %v1575 = vunpack.c.l.s4 1966171168
    %v1576 = vunpack.c.0.s8 %v1575
    %v1577 = vlaneseq
    %v1578 = vshrl.u32 %v1577, 7
    %v1579 = vsub.s32 %v1576, %v1578
    %v1580 = vrot.slane %v1573, %v1579
    %v1581 = vcombine.high %v1580, %v1580
    %v1583 = vunpack.c.l.s4 1966171168
    %v1584 = vunpack.c.0.s8 %v1583
    %v1585 = vlaneseq
    %v1586 = vshrl.u32 %v1585, 7
    %v1587 = vsub.s32 %v1584, %v1586
    %v1588 = vrot.slane %v1580, %v1587
    %v1590 = vunpack.c.l.s4 1966171168
    %v1591 = vunpack.c.0.s8 %v1590
    %v1592 = vlaneseq
    %v1593 = vshrl.u32 %v1592, 7
    %v1594 = vsub.s32 %v1591, %v1593
    %v1595 = vrot.slane %v1581, %v1594
    %1598 = vst [vmem:[%s4] sm:$0x3] %v1588
    %1599 = vst [vmem:[%s4 + $0x8] sm:$0x3] %v1595
    %v1602 = vcombine.low %v1296, %v1297
    %v1604 = vunpack.c.l.s4 1966171168
    %v1605 = vunpack.c.0.s8 %v1604
    %v1606 = vlaneseq
    %v1607 = vshrl.u32 %v1606, 7
    %v1608 = vsub.s32 %v1605, %v1607
    %v1609 = vrot.slane %v1602, %v1608
    %v1610 = vcombine.low %v1609, %v1609
    %v1612 = vunpack.c.l.s4 1966171168
    %v1613 = vunpack.c.0.s8 %v1612
    %v1614 = vlaneseq
    %v1615 = vshrl.u32 %v1614, 7
    %v1616 = vsub.s32 %v1613, %v1615
    %v1617 = vrot.slane %v1610, %v1616
    %v1619 = vunpack.c.l.s4 1966171168
    %v1620 = vunpack.c.0.s8 %v1619
    %v1621 = vlaneseq
    %v1622 = vshrl.u32 %v1621, 7
    %v1623 = vsub.s32 %v1620, %v1622
    %v1624 = vrot.slane %v1609, %v1623
    %1627 = vst [vmem:[%s4] sm:$0xc] %v1617
    %1628 = vst [vmem:[%s4 + $0x8] sm:$0xc] %v1624
    %v1631 = vcombine.low %v1320, %v1321
    %v1633 = vunpack.c.l.s4 1966171168
    %v1634 = vunpack.c.0.s8 %v1633
    %v1635 = vlaneseq
    %v1636 = vshrl.u32 %v1635, 7
    %v1637 = vsub.s32 %v1634, %v1636
    %v1638 = vrot.slane %v1631, %v1637
    %v1639 = vcombine.high %v1638, %v1638
    %v1641 = vunpack.c.l.s4 1966171168
    %v1642 = vunpack.c.0.s8 %v1641
    %v1643 = vlaneseq
    %v1644 = vshrl.u32 %v1643, 7
    %v1645 = vsub.s32 %v1642, %v1644
    %v1646 = vrot.slane %v1638, %v1645
    %v1648 = vunpack.c.l.s4 1966171168
    %v1649 = vunpack.c.0.s8 %v1648
    %v1650 = vlaneseq
    %v1651 = vshrl.u32 %v1650, 7
    %v1652 = vsub.s32 %v1649, %v1651
    %v1653 = vrot.slane %v1639, %v1652
    %v1654 = vcombine.low %v1646, %v1646
    %v1655 = vcombine.low %v1653, %v1653
    %1658 = vst [vmem:[%s4] sm:$0x30] %v1654
    %1659 = vst [vmem:[%s4 + $0x8] sm:$0x30] %v1655
    %v1662 = vcombine.low %v1410, %v1411
    %v1664 = vunpack.c.l.s4 1966171168
    %v1665 = vunpack.c.0.s8 %v1664
    %v1666 = vlaneseq
    %v1667 = vshrl.u32 %v1666, 7
    %v1668 = vsub.s32 %v1665, %v1667
    %v1669 = vrot.slane %v1662, %v1668
    %v1670 = vcombine.low %v1669, %v1669
    %v1672 = vunpack.c.l.s4 1966171168
    %v1673 = vunpack.c.0.s8 %v1672
    %v1674 = vlaneseq
    %v1675 = vshrl.u32 %v1674, 7
    %v1676 = vsub.s32 %v1673, %v1675
    %v1677 = vrot.slane %v1670, %v1676
    %v1679 = vunpack.c.l.s4 1966171168
    %v1680 = vunpack.c.0.s8 %v1679
    %v1681 = vlaneseq
    %v1682 = vshrl.u32 %v1681, 7
    %v1683 = vsub.s32 %v1680, %v1682
    %v1684 = vrot.slane %v1669, %v1683
    %v1685 = vcombine.low %v1677, %v1677
    %v1686 = vcombine.low %v1684, %v1684
    %1689 = vst [vmem:[%s4] sm:$0xc0] %v1685
    %1690 = vst [vmem:[%s4 + $0x8] sm:$0xc0] %v1686
    %v1691 = vld [vmem:[%s4] sm:$0xff]
    %v1692 = vld [vmem:[%s4 + $0x8] sm:$0xff]
    %v1693 = vadd.f32 %v1691, %v1692
    %1694 = vadd.xlane.f32.xlu0 %v1693
    %v1695 = vpop.xlane.xlu0 %1694
    %v1696 = vrot.slane %v1695, 4
    %v1697 = vadd.f32 %v1695, %v1696
    %v1698 = vrot.slane %v1697, 2
    %v1699 = vadd.f32 %v1697, %v1698
    %v1700 = vrot.slane %v1699, 1
    %v1701 = vadd.f32 %v1699, %v1700
    %s1702 = vtos %v1701
    %v1703 = vmul.f32 %v1691, %v1691
    %v1704 = vmul.f32 %v1692, %v1692
    %v1705 = vadd.f32 %v1703, %v1704
    %1706 = vadd.xlane.f32.xlu0 %v1705
    %v1707 = vpop.xlane.xlu0 %1706
    %v1708 = vrot.slane %v1707, 4
    %v1709 = vadd.f32 %v1707, %v1708
    %v1710 = vrot.slane %v1709, 2
    %v1711 = vadd.f32 %v1709, %v1710
    %v1712 = vrot.slane %v1711, 1
    %v1713 = vadd.f32 %v1711, %v1712
    %s1714 = vtos %v1713
    %s1715 = smul.f32 %s1702, 0.00048828125
    %s1716 = smul.f32 %s1714, 0.00048828125
    %s1717 = smul.f32 %s1715, %s1715
    %s1718 = ssub.f32 %s1716, %s1717
    %s1719 = smax.f32 %s1718, 0.0
    %s1720 = sld [smem:[#allocation5]]
    %s1721 = sadd.f32 %s1719, 1e-05
    %v1722 = vstv %s1721
    %v1723 = vrsqrt.pop %v1722
    %s1724 = vtos %v1723
    %s1725 = smul.f32 %s1720, %s1724
    %s1726 = sld [smem:[#allocation7]]
    %s1727 = smul.f32 %s1715, %s1725
    %s1728 = ssub.f32 %s1726, %s1727
    %v1729 = vstv %s1725
    %v1730 = vmul.f32 %v1691, %v1729
    %v1731 = vmul.f32 %v1692, %v1729
    %v1732 = vstv %s1728
    %v1733 = vadd.f32 %v1730, %v1732
    %v1734 = vadd.f32 %v1731, %v1732
    %v1735 = vmax.f32 %v1733, 0.0
    %v1736 = vmax.f32 %v1734, 0.0
    %1737 = vst [vmem:[%s4] sm:$0xff] %v1735
    %1738 = vst [vmem:[%s4 + $0x8] sm:$0xff] %v1736
    %v1741 = vcombine.low %v1416, %v1417
    %v1743 = vunpack.c.l.s4 1966171168
    %v1744 = vunpack.c.0.s8 %v1743
    %v1745 = vlaneseq
    %v1746 = vshrl.u32 %v1745, 7
    %v1747 = vsub.s32 %v1744, %v1746
    %v1748 = vrot.slane %v1741, %v1747
    %v1749 = vcombine.high %v1748, %v1748
    %v1751 = vunpack.c.l.s4 1966171168
    %v1752 = vunpack.c.0.s8 %v1751
    %v1753 = vlaneseq
    %v1754 = vshrl.u32 %v1753, 7
    %v1755 = vsub.s32 %v1752, %v1754
    %v1756 = vrot.slane %v1748, %v1755
    %v1758 = vunpack.c.l.s4 1966171168
    %v1759 = vunpack.c.0.s8 %v1758
    %v1760 = vlaneseq
    %v1761 = vshrl.u32 %v1760, 7
    %v1762 = vsub.s32 %v1759, %v1761
    %v1763 = vrot.slane %v1749, %v1762
    %s1766 = scalar_lea.vmem %s4, 16
    %1767 = vst [vmem:[%s1766] sm:$0x3] %v1756
    %1768 = vst [vmem:[%s1766 + $0x8] sm:$0x3] %v1763
    %v1771 = vcombine.low %v1455, %v1456
    %v1773 = vunpack.c.l.s4 1966171168
    %v1774 = vunpack.c.0.s8 %v1773
    %v1775 = vlaneseq
    %v1776 = vshrl.u32 %v1775, 7
    %v1777 = vsub.s32 %v1774, %v1776
    %v1778 = vrot.slane %v1771, %v1777
    %v1779 = vcombine.low %v1778, %v1778
    %v1781 = vunpack.c.l.s4 1966171168
    %v1782 = vunpack.c.0.s8 %v1781
    %v1783 = vlaneseq
    %v1784 = vshrl.u32 %v1783, 7
    %v1785 = vsub.s32 %v1782, %v1784
    %v1786 = vrot.slane %v1779, %v1785
    %v1788 = vunpack.c.l.s4 1966171168
    %v1789 = vunpack.c.0.s8 %v1788
    %v1790 = vlaneseq
    %v1791 = vshrl.u32 %v1790, 7
    %v1792 = vsub.s32 %v1789, %v1791
    %v1793 = vrot.slane %v1778, %v1792
    %1796 = vst [vmem:[%s1766] sm:$0xc] %v1786
    %1797 = vst [vmem:[%s1766 + $0x8] sm:$0xc] %v1793
    %v1800 = vcombine.low %v1479, %v1480
    %v1802 = vunpack.c.l.s4 1966171168
    %v1803 = vunpack.c.0.s8 %v1802
    %v1804 = vlaneseq
    %v1805 = vshrl.u32 %v1804, 7
    %v1806 = vsub.s32 %v1803, %v1805
    %v1807 = vrot.slane %v1800, %v1806
    %v1808 = vcombine.high %v1807, %v1807
    %v1810 = vunpack.c.l.s4 1966171168
    %v1811 = vunpack.c.0.s8 %v1810
    %v1812 = vlaneseq
    %v1813 = vshrl.u32 %v1812, 7
    %v1814 = vsub.s32 %v1811, %v1813
    %v1815 = vrot.slane %v1807, %v1814
    %v1817 = vunpack.c.l.s4 1966171168
    %v1818 = vunpack.c.0.s8 %v1817
    %v1819 = vlaneseq
    %v1820 = vshrl.u32 %v1819, 7
    %v1821 = vsub.s32 %v1818, %v1820
    %v1822 = vrot.slane %v1808, %v1821
    %v1823 = vcombine.low %v1815, %v1815
    %v1824 = vcombine.low %v1822, %v1822
    %1827 = vst [vmem:[%s1766] sm:$0x30] %v1823
    %1828 = vst [vmem:[%s1766 + $0x8] sm:$0x30] %v1824
    %v1831 = vcombine.low %v1569, %v1570
    %v1833 = vunpack.c.l.s4 1966171168
    %v1834 = vunpack.c.0.s8 %v1833
    %v1835 = vlaneseq
    %v1836 = vshrl.u32 %v1835, 7
    %v1837 = vsub.s32 %v1834, %v1836
    %v1838 = vrot.slane %v1831, %v1837
    %v1839 = vcombine.low %v1838, %v1838
    %v1841 = vunpack.c.l.s4 1966171168
    %v1842 = vunpack.c.0.s8 %v1841
    %v1843 = vlaneseq
    %v1844 = vshrl.u32 %v1843, 7
    %v1845 = vsub.s32 %v1842, %v1844
    %v1846 = vrot.slane %v1839, %v1845
    %v1848 = vunpack.c.l.s4 1966171168
    %v1849 = vunpack.c.0.s8 %v1848
    %v1850 = vlaneseq
    %v1851 = vshrl.u32 %v1850, 7
    %v1852 = vsub.s32 %v1849, %v1851
    %v1853 = vrot.slane %v1838, %v1852
    %v1854 = vcombine.low %v1846, %v1846
    %v1855 = vcombine.low %v1853, %v1853
    %1858 = vst [vmem:[%s1766] sm:$0xc0] %v1854
    %1859 = vst [vmem:[%s1766 + $0x8] sm:$0xc0] %v1855
    %v1860 = vld [vmem:[%s1766] sm:$0xff]
    %v1861 = vld [vmem:[%s1766 + $0x8] sm:$0xff]
    %v1862 = vadd.f32 %v1860, %v1861
    %1863 = vadd.xlane.f32.xlu0 %v1862
    %v1864 = vpop.xlane.xlu0 %1863
    %v1865 = vrot.slane %v1864, 4
    %v1866 = vadd.f32 %v1864, %v1865
    %v1867 = vrot.slane %v1866, 2
    %v1868 = vadd.f32 %v1866, %v1867
    %v1869 = vrot.slane %v1868, 1
    %v1870 = vadd.f32 %v1868, %v1869
    %s1871 = vtos %v1870
    %v1872 = vmul.f32 %v1860, %v1860
    %v1873 = vmul.f32 %v1861, %v1861
    %v1874 = vadd.f32 %v1872, %v1873
    %1875 = vadd.xlane.f32.xlu0 %v1874
    %v1876 = vpop.xlane.xlu0 %1875
    %v1877 = vrot.slane %v1876, 4
    %v1878 = vadd.f32 %v1876, %v1877
    %v1879 = vrot.slane %v1878, 2
    %v1880 = vadd.f32 %v1878, %v1879
    %v1881 = vrot.slane %v1880, 1
    %v1882 = vadd.f32 %v1880, %v1881
    %s1883 = vtos %v1882
    %s1884 = smul.f32 %s1871, 0.00048828125
    %s1885 = smul.f32 %s1883, 0.00048828125
    %s1886 = smul.f32 %s1884, %s1884
    %s1887 = ssub.f32 %s1885, %s1886
    %s1888 = smax.f32 %s1887, 0.0
    %s1889 = sld [smem:[#allocation5 + $0x1]]
    %s1890 = sadd.f32 %s1888, 1e-05
    %v1891 = vstv %s1890
    %v1892 = vrsqrt.pop %v1891
    %s1893 = vtos %v1892
    %s1894 = smul.f32 %s1889, %s1893
    %s1895 = sld [smem:[#allocation7 + $0x1]]
    %s1896 = smul.f32 %s1884, %s1894
    %s1897 = ssub.f32 %s1895, %s1896
    %v1898 = vstv %s1894
    %v1899 = vmul.f32 %v1860, %v1898
    %v1900 = vmul.f32 %v1861, %v1898
    %v1901 = vstv %s1897
    %v1902 = vadd.f32 %v1899, %v1901
    %v1903 = vadd.f32 %v1900, %v1901
    %v1904 = vmax.f32 %v1902, 0.0
    %v1905 = vmax.f32 %v1903, 0.0
    %1906 = vst [vmem:[%s1766] sm:$0xff] %v1904
    %1907 = vst [vmem:[%s1766 + $0x8] sm:$0xff] %v1905
    // Predicated region
    $region30: #{conv2d_expand_forward.1} parent=1 // pred_check
      _
    $region31: #{conv2d_expand_forward.1} parent=1 // pred_check_branch
      %1909 = sbr.rel (0) target = $region33
    $region32: #{conv2d_expand_forward.1} parent=1 // pred_region
      _
    $region33: #{conv2d_expand_forward.1} parent=1 // pred_fallthru
      _
    // Predicated region
    $region34: #{conv2d_expand_forward.1} parent=1 // pred_check
      _
    $region35: #{conv2d_expand_forward.1} parent=1 // pred_check_branch
      %1911 = sbr.rel (0) target = $region37
    $region36: #{conv2d_expand_forward.1} parent=1 // pred_region
      _
    $region37: #{conv2d_expand_forward.1} parent=1 // pred_fallthru
      _
    %1912 = vsyncpa [#allocation4], 1
    %1913 = vsyncpa [#allocation6], 1

</llo_original>
